<compile_context>
chip_gen: v7x
topology: tpu7x:2x2x1
jax: 0.10.0
libtpu: 0.0.40
codegen_flags: <defaults>
</compile_context>

<pallas_src>
import functools

import numpy as np
import jax
import jax.numpy as jnp
from jax.experimental import pallas as pl
from jax.experimental.pallas import tpu as pltpu


def _round_up(x: int, m: int) -> int:
    return ((x + m - 1) // m) * m


def _adaptive_pool_bins(in_size: int, out_size: int):
    """PyTorch AdaptiveAvgPool bin boundaries: [floor(i*in/out), ceil((i+1)*in/out))."""
    bins = []
    for i in range(out_size):
        start = (i * in_size) // out_size
        end = -((-(i + 1) * in_size) // out_size)
        bins.append((start, end))
    return bins


def _adaptive_pool_matrix(in_size: int, out_size: int) -> np.ndarray:
    """Averaging matrix P (out_size, in_size) reproducing nn.AdaptiveAvgPool1d bins."""
    p = np.zeros((out_size, in_size), dtype=np.float32)
    for i, (s, e) in enumerate(_adaptive_pool_bins(in_size, out_size)):
        p[i, s:e] = 1.0 / float(e - s)
    return p


def _pool_kernel(x_ref, pw_ref, o_ref, *, h_bins):
    """Separable adaptive-avg-pool of a (TM, H, W) block of planes.

    H-stage: windowed means over rows on the VPU (sublane sums).
    W-stage: one small lane-dense MXU matmul per output row against the
             VMEM-resident (W, OWP) operator (OWP = 128-padded output width).
    """
    pw = pw_ref[...]                                    # (W, OWP) f32, resident
    for p, (s, e) in enumerate(h_bins):                 # static, <= out_size iters
        win = x_ref[:, s:e, :].astype(jnp.float32)      # (TM, e-s, W)
        row_sum = jnp.sum(win, axis=1)                  # (TM, W)   VPU sublane sum
        y = jnp.dot(row_sum, pw,                        # (TM, OWP) tiny MXU matmul
                    preferred_element_type=jnp.float32)
        o_ref[:, p, :] = (y * (1.0 / float(e - s))).astype(o_ref.dtype)


def _vmem_budget_bytes() -> int:
    """Per-kernel VMEM limit, derived from the actual device when possible."""
    try:
        cap = int(pltpu.get_tpu_info().vmem_capacity_bytes)
    except Exception:
        cap = 64 * 1024 * 1024          # conservative default: v7x per-core VMEM
    # Leave headroom for Mosaic-internal scratch / pipeline bookkeeping.
    return max(32 * 1024 * 1024, min(cap - 16 * 1024 * 1024, 96 * 1024 * 1024))


def alexnet_encoder_forward(x: jax.Array, output_size: int = 14,
                            *, force_pallas: bool = False) -> jax.Array:
    """x: (N, C, H, W) float -> (N, output_size, output_size, C).

    `self.model` in the reference module is an empty nn.Sequential (identity),
    so the forward pass is AdaptiveAvgPool2d((14, 14)) followed by NCHW->NHWC.
    """
    N, C, H, W = x.shape
    OH = OW = int(output_size)
    M = N * C
    itemsize = np.dtype(x.dtype).itemsize
    plane_bytes = H * W * itemsize

    h_bins = _adaptive_pool_bins(H, OH)
    pw_mat = _adaptive_pool_matrix(W, OW)               # (OW, W), rows sum to 1

    vmem_limit = _vmem_budget_bytes()

    # ---------------- fast path (plain XLA) ----------------
    # Tiny problems are dominated by pallas_call launch / DMA-setup overhead;
    # planes too large to double-buffer in VMEM cannot be tiled by this kernel.
    too_small = x.size * itemsize < (1 << 20)
    too_big = 4 * plane_bytes > vmem_limit
    if (too_small and not force_pallas) or too_big:
        ph_mat = _adaptive_pool_matrix(H, OH)
        y = jnp.einsum("oh,pw,nchw->ncop",
                       jnp.asarray(ph_mat), jnp.asarray(pw_mat),
                       x.astype(jnp.float32)).astype(x.dtype)
        return jnp.transpose(y, (0, 2, 3, 1))

    # ---------------- Pallas path ----------------
    OWP = max(128, _round_up(OW, 128))                  # lane-dense output rows

    # W-pooling operator, zero-padded to OWP lanes.  Only W*OWP*4 bytes, so it
    # stays VMEM-resident for the whole kernel (constant index_map).
    pwT = np.zeros((W, OWP), dtype=np.float32)
    pwT[:, :OW] = pw_mat.T
    pwT = jnp.asarray(pwT)

    # Plane-block size: fill roughly half the VMEM budget with the X double
    # buffer, and keep >= 2 grid blocks so both v7x TensorCores get work.
    x_db_budget = vmem_limit // 2
    tm_cap = max(1, min(512, x_db_budget // (2 * plane_bytes)))
    TM = int(min(tm_cap, max(1, -(-M // 2))))           # ceil(M/2) capped
    grid = (pl.cdiv(M, TM),)

    x_planes = x.reshape(M, H, W)                       # free reshape, no copy

    kernel = functools.partial(_pool_kernel, h_bins=h_bins)

    pooled = pl.pallas_call(
        kernel,
        out_shape=jax.ShapeDtypeStruct((M, OH, OWP), x.dtype),
        grid_spec=pltpu.PrefetchScalarGridSpec(
            num_scalar_prefetch=0,
            grid=grid,
            in_specs=[
                # Block covers full (H, W) -> no (8,128) padding constraints.
                pl.BlockSpec((TM, H, W), lambda m: (m, 0, 0)),
                # Constant index -> fetched once, stays resident in VMEM.
                pl.BlockSpec((W, OWP), lambda m: (0, 0)),
            ],
            out_specs=pl.BlockSpec((TM, OH, OWP), lambda m: (m, 0, 0)),
        ),
        compiler_params=pltpu.CompilerParams(
            dimension_semantics=("parallel",),
            vmem_limit_bytes=int(vmem_limit),
        ),
    )(x_planes, pwT)

    pooled = pooled[:, :, :OW].reshape(N, C, OH, OW)
    # out.permute(0, 2, 3, 1): NCHW -> NHWC (tiny layout glue left to XLA).
    return jnp.transpose(pooled, (0, 2, 3, 1))


def _reference_forward_np(x: np.ndarray, output_size: int = 14) -> np.ndarray:
    """Pure-numpy (float64) reference of the same literal forward."""
    N, C, H, W = x.shape
    ph = _adaptive_pool_matrix(H, output_size).astype(np.float64)
    pw = _adaptive_pool_matrix(W, output_size).astype(np.float64)
    y = np.einsum("oh,nchw,pw->ncop", ph, x.astype(np.float64), pw)
    return np.transpose(y, (0, 2, 3, 1)).astype(x.dtype)


if __name__ == "__main__":
    key = jax.random.PRNGKey(0)
    # Small, module-consistent input: NCHW image batch, output_size=14.
    N, C, H, W = 2, 4, 16, 16
    x = jax.random.normal(key, (N, C, H, W), dtype=jnp.float32)

    # force_pallas=True so the demo exercises the Pallas kernel (otherwise the
    # sub-MiB fast path would bypass it).
    out = alexnet_encoder_forward(x, output_size=14, force_pallas=True)
    out = jax.block_until_ready(out)

    assert out.shape == (N, 14, 14, C), out.shape
    assert out.dtype == jnp.float32, out.dtype

    ref = _reference_forward_np(np.asarray(x), output_size=14)
    np.testing.assert_allclose(np.asarray(out), ref, rtol=1e-4, atol=1e-4)

    print("KERNEL_OK")
</pallas_src>

<mosaic_0001>
module attributes {stable_mosaic.version = 11 : i64} {
  func.func @_pool_kernel(%arg0: i32, %arg1: memref<4x16x16xf32, #tpu.memory_space<vmem>>, %arg2: memref<16x128xf32, #tpu.memory_space<vmem>>, %arg3: memref<4x14x128xf32, #tpu.memory_space<vmem>>) attributes {dimension_semantics = [#tpu.dimension_semantics<parallel>], iteration_bounds = array<i64: 2>, scalar_prefetch = 0 : i64, scratch_operands = 0 : i64, tpu.core_type = #tpu.core_type<tc>, window_params = [{transform_indices = @transform_0, window_bounds = array<i64: 4, 16, 16>}, {pipeline_mode = #tpu.pipeline_mode<synchronous>, transform_indices = @transform_1, window_bounds = array<i64: 16, 128>}, {transform_indices = @transform_2, window_bounds = array<i64: 4, 14, 128>}]} {
    %c0 = arith.constant 0 : index
    %c0_0 = arith.constant 0 : index
    %0 = vector.load %arg2[%c0, %c0_0] : memref<16x128xf32, #tpu.memory_space<vmem>>, vector<16x128xf32>
    %c0_1 = arith.constant 0 : index
    %c0_2 = arith.constant 0 : index
    %c0_3 = arith.constant 0 : index
    %1 = vector.load %arg1[%c0_1, %c0_2, %c0_3] : memref<4x16x16xf32, #tpu.memory_space<vmem>>, vector<4x2x16xf32>
    %cst = arith.constant dense<0.000000e+00> : vector<4x16xf32>
    %2 = vector.multi_reduction <add>, %1, %cst [1] : vector<4x2x16xf32> to vector<4x16xf32>
    %cst_4 = arith.constant dense<0.000000e+00> : vector<4x128xf32>
    %3 = tpu.matmul %2, %0, %cst_4 {dimension_numbers = #tpu.dot_dimension_numbers<[1], [0], [0], [1], [0, 0, 1, 1], [], []>} : vector<4x16xf32>, vector<16x128xf32>, vector<4x128xf32> -> vector<4x128xf32>
    %cst_5 = arith.constant 5.000000e-01 : f32
    %4 = vector.broadcast %cst_5 : f32 to vector<4x128xf32>
    %5 = arith.mulf %3, %4 : vector<4x128xf32>
    %c0_6 = arith.constant 0 : index
    %c0_7 = arith.constant 0 : index
    %c0_8 = arith.constant 0 : index
    %6 = vector.load %arg3[%c0_6, %c0_7, %c0_8] : memref<4x14x128xf32, #tpu.memory_space<vmem>>, vector<4x1x128xf32>
    %7 = vector.shape_cast %6 : vector<4x1x128xf32> to vector<4x128xf32>
    %8 = vector.shape_cast %5 : vector<4x128xf32> to vector<4x1x128xf32>
    tpu.vector_store %arg3[%c0_6, %c0_7, %c0_8], %8 {strides = array<i32>} : memref<4x14x128xf32, #tpu.memory_space<vmem>>, vector<4x1x128xf32>,
    %c0_9 = arith.constant 0 : index
    %c1 = arith.constant 1 : index
    %c0_10 = arith.constant 0 : index
    %9 = vector.load %arg1[%c0_9, %c1, %c0_10] : memref<4x16x16xf32, #tpu.memory_space<vmem>>, vector<4x2x16xf32>
    %cst_11 = arith.constant dense<0.000000e+00> : vector<4x16xf32>
    %10 = vector.multi_reduction <add>, %9, %cst_11 [1] : vector<4x2x16xf32> to vector<4x16xf32>
    %cst_12 = arith.constant dense<0.000000e+00> : vector<4x128xf32>
    %11 = tpu.matmul %10, %0, %cst_12 {dimension_numbers = #tpu.dot_dimension_numbers<[1], [0], [0], [1], [0, 0, 1, 1], [], []>} : vector<4x16xf32>, vector<16x128xf32>, vector<4x128xf32> -> vector<4x128xf32>
    %cst_13 = arith.constant 5.000000e-01 : f32
    %12 = vector.broadcast %cst_13 : f32 to vector<4x128xf32>
    %13 = arith.mulf %11, %12 : vector<4x128xf32>
    %c0_14 = arith.constant 0 : index
    %c1_15 = arith.constant 1 : index
    %c0_16 = arith.constant 0 : index
    %14 = vector.load %arg3[%c0_14, %c1_15, %c0_16] : memref<4x14x128xf32, #tpu.memory_space<vmem>>, vector<4x1x128xf32>
    %15 = vector.shape_cast %14 : vector<4x1x128xf32> to vector<4x128xf32>
    %16 = vector.shape_cast %13 : vector<4x128xf32> to vector<4x1x128xf32>
    tpu.vector_store %arg3[%c0_14, %c1_15, %c0_16], %16 {strides = array<i32>} : memref<4x14x128xf32, #tpu.memory_space<vmem>>, vector<4x1x128xf32>,
    %c0_17 = arith.constant 0 : index
    %c2 = arith.constant 2 : index
    %c0_18 = arith.constant 0 : index
    %17 = vector.load %arg1[%c0_17, %c2, %c0_18] : memref<4x16x16xf32, #tpu.memory_space<vmem>>, vector<4x2x16xf32>
    %cst_19 = arith.constant dense<0.000000e+00> : vector<4x16xf32>
    %18 = vector.multi_reduction <add>, %17, %cst_19 [1] : vector<4x2x16xf32> to vector<4x16xf32>
    %cst_20 = arith.constant dense<0.000000e+00> : vector<4x128xf32>
    %19 = tpu.matmul %18, %0, %cst_20 {dimension_numbers = #tpu.dot_dimension_numbers<[1], [0], [0], [1], [0, 0, 1, 1], [], []>} : vector<4x16xf32>, vector<16x128xf32>, vector<4x128xf32> -> vector<4x128xf32>
    %cst_21 = arith.constant 5.000000e-01 : f32
    %20 = vector.broadcast %cst_21 : f32 to vector<4x128xf32>
    %21 = arith.mulf %19, %20 : vector<4x128xf32>
    %c0_22 = arith.constant 0 : index
    %c2_23 = arith.constant 2 : index
    %c0_24 = arith.constant 0 : index
    %22 = vector.load %arg3[%c0_22, %c2_23, %c0_24] : memref<4x14x128xf32, #tpu.memory_space<vmem>>, vector<4x1x128xf32>
    %23 = vector.shape_cast %22 : vector<4x1x128xf32> to vector<4x128xf32>
    %24 = vector.shape_cast %21 : vector<4x128xf32> to vector<4x1x128xf32>
    tpu.vector_store %arg3[%c0_22, %c2_23, %c0_24], %24 {strides = array<i32>} : memref<4x14x128xf32, #tpu.memory_space<vmem>>, vector<4x1x128xf32>,
    %c0_25 = arith.constant 0 : index
    %c3 = arith.constant 3 : index
    %c0_26 = arith.constant 0 : index
    %25 = vector.load %arg1[%c0_25, %c3, %c0_26] : memref<4x16x16xf32, #tpu.memory_space<vmem>>, vector<4x2x16xf32>
    %cst_27 = arith.constant dense<0.000000e+00> : vector<4x16xf32>
    %26 = vector.multi_reduction <add>, %25, %cst_27 [1] : vector<4x2x16xf32> to vector<4x16xf32>
    %cst_28 = arith.constant dense<0.000000e+00> : vector<4x128xf32>
    %27 = tpu.matmul %26, %0, %cst_28 {dimension_numbers = #tpu.dot_dimension_numbers<[1], [0], [0], [1], [0, 0, 1, 1], [], []>} : vector<4x16xf32>, vector<16x128xf32>, vector<4x128xf32> -> vector<4x128xf32>
    %cst_29 = arith.constant 5.000000e-01 : f32
    %28 = vector.broadcast %cst_29 : f32 to vector<4x128xf32>
    %29 = arith.mulf %27, %28 : vector<4x128xf32>
    %c0_30 = arith.constant 0 : index
    %c3_31 = arith.constant 3 : index
    %c0_32 = arith.constant 0 : index
    %30 = vector.load %arg3[%c0_30, %c3_31, %c0_32] : memref<4x14x128xf32, #tpu.memory_space<vmem>>, vector<4x1x128xf32>
    %31 = vector.shape_cast %30 : vector<4x1x128xf32> to vector<4x128xf32>
    %32 = vector.shape_cast %29 : vector<4x128xf32> to vector<4x1x128xf32>
    tpu.vector_store %arg3[%c0_30, %c3_31, %c0_32], %32 {strides = array<i32>} : memref<4x14x128xf32, #tpu.memory_space<vmem>>, vector<4x1x128xf32>,
    %c0_33 = arith.constant 0 : index
    %c4 = arith.constant 4 : index
    %c0_34 = arith.constant 0 : index
    %33 = vector.load %arg1[%c0_33, %c4, %c0_34] : memref<4x16x16xf32, #tpu.memory_space<vmem>>, vector<4x2x16xf32>
    %cst_35 = arith.constant dense<0.000000e+00> : vector<4x16xf32>
    %34 = vector.multi_reduction <add>, %33, %cst_35 [1] : vector<4x2x16xf32> to vector<4x16xf32>
    %cst_36 = arith.constant dense<0.000000e+00> : vector<4x128xf32>
    %35 = tpu.matmul %34, %0, %cst_36 {dimension_numbers = #tpu.dot_dimension_numbers<[1], [0], [0], [1], [0, 0, 1, 1], [], []>} : vector<4x16xf32>, vector<16x128xf32>, vector<4x128xf32> -> vector<4x128xf32>
    %cst_37 = arith.constant 5.000000e-01 : f32
    %36 = vector.broadcast %cst_37 : f32 to vector<4x128xf32>
    %37 = arith.mulf %35, %36 : vector<4x128xf32>
    %c0_38 = arith.constant 0 : index
    %c4_39 = arith.constant 4 : index
    %c0_40 = arith.constant 0 : index
    %38 = vector.load %arg3[%c0_38, %c4_39, %c0_40] : memref<4x14x128xf32, #tpu.memory_space<vmem>>, vector<4x1x128xf32>
    %39 = vector.shape_cast %38 : vector<4x1x128xf32> to vector<4x128xf32>
    %40 = vector.shape_cast %37 : vector<4x128xf32> to vector<4x1x128xf32>
    tpu.vector_store %arg3[%c0_38, %c4_39, %c0_40], %40 {strides = array<i32>} : memref<4x14x128xf32, #tpu.memory_space<vmem>>, vector<4x1x128xf32>,
    %c0_41 = arith.constant 0 : index
    %c5 = arith.constant 5 : index
    %c0_42 = arith.constant 0 : index
    %41 = vector.load %arg1[%c0_41, %c5, %c0_42] : memref<4x16x16xf32, #tpu.memory_space<vmem>>, vector<4x2x16xf32>
    %cst_43 = arith.constant dense<0.000000e+00> : vector<4x16xf32>
    %42 = vector.multi_reduction <add>, %41, %cst_43 [1] : vector<4x2x16xf32> to vector<4x16xf32>
    %cst_44 = arith.constant dense<0.000000e+00> : vector<4x128xf32>
    %43 = tpu.matmul %42, %0, %cst_44 {dimension_numbers = #tpu.dot_dimension_numbers<[1], [0], [0], [1], [0, 0, 1, 1], [], []>} : vector<4x16xf32>, vector<16x128xf32>, vector<4x128xf32> -> vector<4x128xf32>
    %cst_45 = arith.constant 5.000000e-01 : f32
    %44 = vector.broadcast %cst_45 : f32 to vector<4x128xf32>
    %45 = arith.mulf %43, %44 : vector<4x128xf32>
    %c0_46 = arith.constant 0 : index
    %c5_47 = arith.constant 5 : index
    %c0_48 = arith.constant 0 : index
    %46 = vector.load %arg3[%c0_46, %c5_47, %c0_48] : memref<4x14x128xf32, #tpu.memory_space<vmem>>, vector<4x1x128xf32>
    %47 = vector.shape_cast %46 : vector<4x1x128xf32> to vector<4x128xf32>
    %48 = vector.shape_cast %45 : vector<4x128xf32> to vector<4x1x128xf32>
    tpu.vector_store %arg3[%c0_46, %c5_47, %c0_48], %48 {strides = array<i32>} : memref<4x14x128xf32, #tpu.memory_space<vmem>>, vector<4x1x128xf32>,
    %c0_49 = arith.constant 0 : index
    %c6 = arith.constant 6 : index
    %c0_50 = arith.constant 0 : index
    %49 = vector.load %arg1[%c0_49, %c6, %c0_50] : memref<4x16x16xf32, #tpu.memory_space<vmem>>, vector<4x2x16xf32>
    %cst_51 = arith.constant dense<0.000000e+00> : vector<4x16xf32>
    %50 = vector.multi_reduction <add>, %49, %cst_51 [1] : vector<4x2x16xf32> to vector<4x16xf32>
    %cst_52 = arith.constant dense<0.000000e+00> : vector<4x128xf32>
    %51 = tpu.matmul %50, %0, %cst_52 {dimension_numbers = #tpu.dot_dimension_numbers<[1], [0], [0], [1], [0, 0, 1, 1], [], []>} : vector<4x16xf32>, vector<16x128xf32>, vector<4x128xf32> -> vector<4x128xf32>
    %cst_53 = arith.constant 5.000000e-01 : f32
    %52 = vector.broadcast %cst_53 : f32 to vector<4x128xf32>
    %53 = arith.mulf %51, %52 : vector<4x128xf32>
    %c0_54 = arith.constant 0 : index
    %c6_55 = arith.constant 6 : index
    %c0_56 = arith.constant 0 : index
    %54 = vector.load %arg3[%c0_54, %c6_55, %c0_56] : memref<4x14x128xf32, #tpu.memory_space<vmem>>, vector<4x1x128xf32>
    %55 = vector.shape_cast %54 : vector<4x1x128xf32> to vector<4x128xf32>
    %56 = vector.shape_cast %53 : vector<4x128xf32> to vector<4x1x128xf32>
    tpu.vector_store %arg3[%c0_54, %c6_55, %c0_56], %56 {strides = array<i32>} : memref<4x14x128xf32, #tpu.memory_space<vmem>>, vector<4x1x128xf32>,
    %c0_57 = arith.constant 0 : index
    %c8 = arith.constant 8 : index
    %c0_58 = arith.constant 0 : index
    %57 = vector.load %arg1[%c0_57, %c8, %c0_58] : memref<4x16x16xf32, #tpu.memory_space<vmem>>, vector<4x2x16xf32>
    %cst_59 = arith.constant dense<0.000000e+00> : vector<4x16xf32>
    %58 = vector.multi_reduction <add>, %57, %cst_59 [1] : vector<4x2x16xf32> to vector<4x16xf32>
    %cst_60 = arith.constant dense<0.000000e+00> : vector<4x128xf32>
    %59 = tpu.matmul %58, %0, %cst_60 {dimension_numbers = #tpu.dot_dimension_numbers<[1], [0], [0], [1], [0, 0, 1, 1], [], []>} : vector<4x16xf32>, vector<16x128xf32>, vector<4x128xf32> -> vector<4x128xf32>
    %cst_61 = arith.constant 5.000000e-01 : f32
    %60 = vector.broadcast %cst_61 : f32 to vector<4x128xf32>
    %61 = arith.mulf %59, %60 : vector<4x128xf32>
    %c0_62 = arith.constant 0 : index
    %c7 = arith.constant 7 : index
    %c0_63 = arith.constant 0 : index
    %62 = vector.load %arg3[%c0_62, %c7, %c0_63] : memref<4x14x128xf32, #tpu.memory_space<vmem>>, vector<4x1x128xf32>
    %63 = vector.shape_cast %62 : vector<4x1x128xf32> to vector<4x128xf32>
    %64 = vector.shape_cast %61 : vector<4x128xf32> to vector<4x1x128xf32>
    tpu.vector_store %arg3[%c0_62, %c7, %c0_63], %64 {strides = array<i32>} : memref<4x14x128xf32, #tpu.memory_space<vmem>>, vector<4x1x128xf32>,
    %c0_64 = arith.constant 0 : index
    %c9 = arith.constant 9 : index
    %c0_65 = arith.constant 0 : index
    %65 = vector.load %arg1[%c0_64, %c9, %c0_65] : memref<4x16x16xf32, #tpu.memory_space<vmem>>, vector<4x2x16xf32>
    %cst_66 = arith.constant dense<0.000000e+00> : vector<4x16xf32>
    %66 = vector.multi_reduction <add>, %65, %cst_66 [1] : vector<4x2x16xf32> to vector<4x16xf32>
    %cst_67 = arith.constant dense<0.000000e+00> : vector<4x128xf32>
    %67 = tpu.matmul %66, %0, %cst_67 {dimension_numbers = #tpu.dot_dimension_numbers<[1], [0], [0], [1], [0, 0, 1, 1], [], []>} : vector<4x16xf32>, vector<16x128xf32>, vector<4x128xf32> -> vector<4x128xf32>
    %cst_68 = arith.constant 5.000000e-01 : f32
    %68 = vector.broadcast %cst_68 : f32 to vector<4x128xf32>
    %69 = arith.mulf %67, %68 : vector<4x128xf32>
    %c0_69 = arith.constant 0 : index
    %c8_70 = arith.constant 8 : index
    %c0_71 = arith.constant 0 : index
    %70 = vector.load %arg3[%c0_69, %c8_70, %c0_71] : memref<4x14x128xf32, #tpu.memory_space<vmem>>, vector<4x1x128xf32>
    %71 = vector.shape_cast %70 : vector<4x1x128xf32> to vector<4x128xf32>
    %72 = vector.shape_cast %69 : vector<4x128xf32> to vector<4x1x128xf32>
    tpu.vector_store %arg3[%c0_69, %c8_70, %c0_71], %72 {strides = array<i32>} : memref<4x14x128xf32, #tpu.memory_space<vmem>>, vector<4x1x128xf32>,
    %c0_72 = arith.constant 0 : index
    %c10 = arith.constant 10 : index
    %c0_73 = arith.constant 0 : index
    %73 = vector.load %arg1[%c0_72, %c10, %c0_73] : memref<4x16x16xf32, #tpu.memory_space<vmem>>, vector<4x2x16xf32>
    %cst_74 = arith.constant dense<0.000000e+00> : vector<4x16xf32>
    %74 = vector.multi_reduction <add>, %73, %cst_74 [1] : vector<4x2x16xf32> to vector<4x16xf32>
    %cst_75 = arith.constant dense<0.000000e+00> : vector<4x128xf32>
    %75 = tpu.matmul %74, %0, %cst_75 {dimension_numbers = #tpu.dot_dimension_numbers<[1], [0], [0], [1], [0, 0, 1, 1], [], []>} : vector<4x16xf32>, vector<16x128xf32>, vector<4x128xf32> -> vector<4x128xf32>
    %cst_76 = arith.constant 5.000000e-01 : f32
    %76 = vector.broadcast %cst_76 : f32 to vector<4x128xf32>
    %77 = arith.mulf %75, %76 : vector<4x128xf32>
    %c0_77 = arith.constant 0 : index
    %c9_78 = arith.constant 9 : index
    %c0_79 = arith.constant 0 : index
    %78 = vector.load %arg3[%c0_77, %c9_78, %c0_79] : memref<4x14x128xf32, #tpu.memory_space<vmem>>, vector<4x1x128xf32>
    %79 = vector.shape_cast %78 : vector<4x1x128xf32> to vector<4x128xf32>
    %80 = vector.shape_cast %77 : vector<4x128xf32> to vector<4x1x128xf32>
    tpu.vector_store %arg3[%c0_77, %c9_78, %c0_79], %80 {strides = array<i32>} : memref<4x14x128xf32, #tpu.memory_space<vmem>>, vector<4x1x128xf32>,
    %c0_80 = arith.constant 0 : index
    %c11 = arith.constant 11 : index
    %c0_81 = arith.constant 0 : index
    %81 = vector.load %arg1[%c0_80, %c11, %c0_81] : memref<4x16x16xf32, #tpu.memory_space<vmem>>, vector<4x2x16xf32>
    %cst_82 = arith.constant dense<0.000000e+00> : vector<4x16xf32>
    %82 = vector.multi_reduction <add>, %81, %cst_82 [1] : vector<4x2x16xf32> to vector<4x16xf32>
    %cst_83 = arith.constant dense<0.000000e+00> : vector<4x128xf32>
    %83 = tpu.matmul %82, %0, %cst_83 {dimension_numbers = #tpu.dot_dimension_numbers<[1], [0], [0], [1], [0, 0, 1, 1], [], []>} : vector<4x16xf32>, vector<16x128xf32>, vector<4x128xf32> -> vector<4x128xf32>
    %cst_84 = arith.constant 5.000000e-01 : f32
    %84 = vector.broadcast %cst_84 : f32 to vector<4x128xf32>
    %85 = arith.mulf %83, %84 : vector<4x128xf32>
    %c0_85 = arith.constant 0 : index
    %c10_86 = arith.constant 10 : index
    %c0_87 = arith.constant 0 : index
    %86 = vector.load %arg3[%c0_85, %c10_86, %c0_87] : memref<4x14x128xf32, #tpu.memory_space<vmem>>, vector<4x1x128xf32>
    %87 = vector.shape_cast %86 : vector<4x1x128xf32> to vector<4x128xf32>
    %88 = vector.shape_cast %85 : vector<4x128xf32> to vector<4x1x128xf32>
    tpu.vector_store %arg3[%c0_85, %c10_86, %c0_87], %88 {strides = array<i32>} : memref<4x14x128xf32, #tpu.memory_space<vmem>>, vector<4x1x128xf32>,
    %c0_88 = arith.constant 0 : index
    %c12 = arith.constant 12 : index
    %c0_89 = arith.constant 0 : index
    %89 = vector.load %arg1[%c0_88, %c12, %c0_89] : memref<4x16x16xf32, #tpu.memory_space<vmem>>, vector<4x2x16xf32>
    %cst_90 = arith.constant dense<0.000000e+00> : vector<4x16xf32>
    %90 = vector.multi_reduction <add>, %89, %cst_90 [1] : vector<4x2x16xf32> to vector<4x16xf32>
    %cst_91 = arith.constant dense<0.000000e+00> : vector<4x128xf32>
    %91 = tpu.matmul %90, %0, %cst_91 {dimension_numbers = #tpu.dot_dimension_numbers<[1], [0], [0], [1], [0, 0, 1, 1], [], []>} : vector<4x16xf32>, vector<16x128xf32>, vector<4x128xf32> -> vector<4x128xf32>
    %cst_92 = arith.constant 5.000000e-01 : f32
    %92 = vector.broadcast %cst_92 : f32 to vector<4x128xf32>
    %93 = arith.mulf %91, %92 : vector<4x128xf32>
    %c0_93 = arith.constant 0 : index
    %c11_94 = arith.constant 11 : index
    %c0_95 = arith.constant 0 : index
    %94 = vector.load %arg3[%c0_93, %c11_94, %c0_95] : memref<4x14x128xf32, #tpu.memory_space<vmem>>, vector<4x1x128xf32>
    %95 = vector.shape_cast %94 : vector<4x1x128xf32> to vector<4x128xf32>
    %96 = vector.shape_cast %93 : vector<4x128xf32> to vector<4x1x128xf32>
    tpu.vector_store %arg3[%c0_93, %c11_94, %c0_95], %96 {strides = array<i32>} : memref<4x14x128xf32, #tpu.memory_space<vmem>>, vector<4x1x128xf32>,
    %c0_96 = arith.constant 0 : index
    %c13 = arith.constant 13 : index
    %c0_97 = arith.constant 0 : index
    %97 = vector.load %arg1[%c0_96, %c13, %c0_97] : memref<4x16x16xf32, #tpu.memory_space<vmem>>, vector<4x2x16xf32>
    %cst_98 = arith.constant dense<0.000000e+00> : vector<4x16xf32>
    %98 = vector.multi_reduction <add>, %97, %cst_98 [1] : vector<4x2x16xf32> to vector<4x16xf32>
    %cst_99 = arith.constant dense<0.000000e+00> : vector<4x128xf32>
    %99 = tpu.matmul %98, %0, %cst_99 {dimension_numbers = #tpu.dot_dimension_numbers<[1], [0], [0], [1], [0, 0, 1, 1], [], []>} : vector<4x16xf32>, vector<16x128xf32>, vector<4x128xf32> -> vector<4x128xf32>
    %cst_100 = arith.constant 5.000000e-01 : f32
    %100 = vector.broadcast %cst_100 : f32 to vector<4x128xf32>
    %101 = arith.mulf %99, %100 : vector<4x128xf32>
    %c0_101 = arith.constant 0 : index
    %c12_102 = arith.constant 12 : index
    %c0_103 = arith.constant 0 : index
    %102 = vector.load %arg3[%c0_101, %c12_102, %c0_103] : memref<4x14x128xf32, #tpu.memory_space<vmem>>, vector<4x1x128xf32>
    %103 = vector.shape_cast %102 : vector<4x1x128xf32> to vector<4x128xf32>
    %104 = vector.shape_cast %101 : vector<4x128xf32> to vector<4x1x128xf32>
    tpu.vector_store %arg3[%c0_101, %c12_102, %c0_103], %104 {strides = array<i32>} : memref<4x14x128xf32, #tpu.memory_space<vmem>>, vector<4x1x128xf32>,
    %c0_104 = arith.constant 0 : index
    %c14 = arith.constant 14 : index
    %c0_105 = arith.constant 0 : index
    %105 = vector.load %arg1[%c0_104, %c14, %c0_105] : memref<4x16x16xf32, #tpu.memory_space<vmem>>, vector<4x2x16xf32>
    %cst_106 = arith.constant dense<0.000000e+00> : vector<4x16xf32>
    %106 = vector.multi_reduction <add>, %105, %cst_106 [1] : vector<4x2x16xf32> to vector<4x16xf32>
    %cst_107 = arith.constant dense<0.000000e+00> : vector<4x128xf32>
    %107 = tpu.matmul %106, %0, %cst_107 {dimension_numbers = #tpu.dot_dimension_numbers<[1], [0], [0], [1], [0, 0, 1, 1], [], []>} : vector<4x16xf32>, vector<16x128xf32>, vector<4x128xf32> -> vector<4x128xf32>
    %cst_108 = arith.constant 5.000000e-01 : f32
    %108 = vector.broadcast %cst_108 : f32 to vector<4x128xf32>
    %109 = arith.mulf %107, %108 : vector<4x128xf32>
    %c0_109 = arith.constant 0 : index
    %c13_110 = arith.constant 13 : index
    %c0_111 = arith.constant 0 : index
    %110 = vector.load %arg3[%c0_109, %c13_110, %c0_111] : memref<4x14x128xf32, #tpu.memory_space<vmem>>, vector<4x1x128xf32>
    %111 = vector.shape_cast %110 : vector<4x1x128xf32> to vector<4x128xf32>
    %112 = vector.shape_cast %109 : vector<4x128xf32> to vector<4x1x128xf32>
    tpu.vector_store %arg3[%c0_109, %c13_110, %c0_111], %112 {strides = array<i32>} : memref<4x14x128xf32, #tpu.memory_space<vmem>>, vector<4x1x128xf32>,
    return
  }
  func.func @transform_0(%arg0: i32) -> (i32, i32, i32) {
    %c0_i32 = arith.constant 0 : i32
    %c0_i32_0 = arith.constant 0 : i32
    %c0_i32_1 = arith.constant 0 : i32
    return %arg0, %c0_i32, %c0_i32_0 : i32, i32, i32
  }
  func.func @transform_1(%arg0: i32) -> (i32, i32) {
    %c0_i32 = arith.constant 0 : i32
    %c0_i32_0 = arith.constant 0 : i32
    %c0_i32_1 = arith.constant 0 : i32
    return %c0_i32, %c0_i32_0 : i32, i32
  }
  func.func @transform_2(%arg0: i32) -> (i32, i32, i32) {
    %c0_i32 = arith.constant 0 : i32
    %c0_i32_0 = arith.constant 0 : i32
    %c0_i32_1 = arith.constant 0 : i32
    return %arg0, %c0_i32, %c0_i32_0 : i32, i32, i32
  }
}

</mosaic_0001>

<llo_original>
// kernel: tpu_custom_call.1
$region0: #{tpu_custom_call.1}
  #allocation0 [shape = 'u32[]', space=smem, size = 0x4, offset = 0x4, fixed_abs, tag = 'smem constant byte address 0x4 - core index']
  #allocation1 [shape = 'u32[144,128]{1,0:T(1,128)}', space=vmem, size = 0x12000, scoped, tag = 'internal scratch']
  %s0 = inlined_call_operand.hbm [shape: f32[8,16,16], index: 0, kind: input, shape index: {}]
  %s1 = inlined_call_operand.hbm [shape: f32[16,128], index: 1, kind: input, shape index: {}]
  %s2 = inlined_call_operand.vmem [shape: f32[8,14,128], index: 2, kind: output, shape index: {}]
  %s3 = sld [smem:[#allocation0]]
  $region49: #{tpu_custom_call.1} parent=0
    _
  %s5 = ssub.s32 1, %s3
  %s6 = scalar_select 0, %s5, %s3
  $region1: #{tpu_custom_call.1} parent=0
    #allocation2 [shape = 'u8[65536]{0}', space=vmem, size = 0x10000, scoped, tag = 'input window, operand 0']
    #allocation3 [shape = 's32[2]{0}', space=sflag, size = 0x8, scoped, tag = 'scoped memory for tpu_custom_call.1']
    #allocation4 [shape = 'u8[8192]{0}', space=vmem, size = 0x2000, scoped, tag = 'input window, operand 1, single buffered']
    #allocation5 [shape = 's32[1]{0}', space=sflag, size = 0x4, scoped, tag = 'scoped memory for tpu_custom_call.1']
    %7 = vsyncpa [#allocation3], 0
    %s8 = scalar_lea.sflag [#allocation3], 1
    %9 = vsyncpa %s8, 0
    %10 = vsyncpa [#allocation5], 0
    loop: start=0, step=1, limit=4
    $region2: #{tpu_custom_call.1} parent=1 // loop_pre_header
      _
    $region3: #{tpu_custom_call.1} parent=1 // loop_header
      %s12 = sphi 0, %s16
      %p13 = scmp.ge.s32.totalorder %s12, 4
      %s22 = sphi 0, %s24
      %s25 = sphi 0, %s22
      %s26 = sphi 0, %s25
      %s42 = sphi 0, %s26
      %s46 = sphi 0, %s46
      %s48 = sphi 0, %s46
      %s49 = sphi 0, %s48
      %s63 = sphi 0, %s49
      %s69 = sphi 0, %s71
      %s72 = sphi 0, %s69
      %s73 = sphi 0, %s72
      %s89 = sphi 0, %s73
    $region4: #{tpu_custom_call.1} parent=1 // loop_header_branch
      %15 = sbr.rel (%p13) target = $region8
    $region5: #{tpu_custom_call.1} parent=1 // loop_body
      %s17 = ssub.s32 %s12, 1
      %s18 = ssub.s32 %s12, 2
      %s19 = sadd.s32 %s12, 1
      %s20 = ssub.s32 %s12, %s19
      %p21 = scmp.eq.s32.totalorder %s20, 0
      %s23 = sadd.s32 %s22, 1
      %s24 = scalar_select %p21, %s22, %s23
      %p27 = pneg %p21
      %p28 = scmp.eq.s32.totalorder %s12, 1
      %p29 = por %p27, %p28
      %p30 = scmp.ne.s32.totalorder %s22, %s25
      %p31 = scmp.eq.s32.totalorder %s12, 0
      %p32 = por %p30, %p31
      %p33 = scmp.ne.s32.totalorder %s22, %s25
      %p34 = scmp.eq.s32.totalorder %s17, 1
      %p35 = por %p33, %p34
      %p36 = scmp.ne.s32.totalorder %s25, %s26
      %p37 = scmp.eq.s32.totalorder %s17, 0
      %p38 = por %p36, %p37
      %p39 = scmp.ne.s32.totalorder %s25, %s26
      %p40 = scmp.eq.s32.totalorder %s18, 1
      %p41 = por %p39, %p40
      %p43 = scmp.ne.s32.totalorder %s26, %s42
      %p44 = scmp.eq.s32.totalorder %s18, 0
      %p45 = por %p43, %p44
      %s47 = sadd.s32 %s46, 1
      %p50 = scmp.eq.s32.totalorder %s12, 1
      %p51 = scmp.ne.s32.totalorder %s46, %s48
      %p52 = scmp.eq.s32.totalorder %s12, 0
      %p53 = por %p51, %p52
      %p54 = scmp.ne.s32.totalorder %s46, %s48
      %p55 = scmp.eq.s32.totalorder %s17, 1
      %p56 = por %p54, %p55
      %p57 = scmp.ne.s32.totalorder %s48, %s49
      %p58 = scmp.eq.s32.totalorder %s17, 0
      %p59 = por %p57, %p58
      %p60 = scmp.ne.s32.totalorder %s48, %s49
      %p61 = scmp.eq.s32.totalorder %s18, 1
      %p62 = por %p60, %p61
      %p64 = scmp.ne.s32.totalorder %s49, %s63
      %p65 = scmp.eq.s32.totalorder %s18, 0
      %p66 = por %p64, %p65
      %s67 = ssub.s32 %s12, %s19
      %p68 = scmp.eq.s32.totalorder %s67, 0
      %s70 = sadd.s32 %s69, 1
      %s71 = scalar_select %p68, %s69, %s70
      %p74 = pneg %p68
      %p75 = scmp.eq.s32.totalorder %s12, 1
      %p76 = por %p74, %p75
      %p77 = scmp.ne.s32.totalorder %s69, %s72
      %p78 = scmp.eq.s32.totalorder %s12, 0
      %p79 = por %p77, %p78
      %p80 = scmp.ne.s32.totalorder %s69, %s72
      %p81 = scmp.eq.s32.totalorder %s17, 1
      %p82 = por %p80, %p81
      %p83 = scmp.ne.s32.totalorder %s72, %s73
      %p84 = scmp.eq.s32.totalorder %s17, 0
      %p85 = por %p83, %p84
      %p86 = scmp.ne.s32.totalorder %s72, %s73
      %p87 = scmp.eq.s32.totalorder %s18, 1
      %p88 = por %p86, %p87
      %p90 = scmp.ne.s32.totalorder %s73, %s89
      %p91 = scmp.eq.s32.totalorder %s18, 0
      %p92 = por %p90, %p91
      %p93 = scmp.le.s32.totalorder 1, %s12
      %p94 = scmp.lt.s32.totalorder %s12, 3
      %p95 = pnand %p93, %p94
      %p96 = pneg %p95
      // Predicated region
      $region9: #{tpu_custom_call.1} parent=5 // pred_check
        _
      $region10: #{tpu_custom_call.1} parent=5 // pred_check_branch
        %98 = sbr.rel (%p95) target = $region12
      $region11: #{tpu_custom_call.1} parent=5 // pred_region
        %s99 = ssub.s32 %s12, 1
        // Predicated region
        $region13: #{tpu_custom_call.1} parent=11 // pred_check
          %p100 = pneg %p59
        $region14: #{tpu_custom_call.1} parent=11 // pred_check_branch
          %102 = sbr.rel (%p100) target = $region16
        $region15: #{tpu_custom_call.1} parent=11 // pred_region
          %s104 = ssub.s32 256, 256
          %105 = vsyncadd [#allocation5], %s104
          %s106 = sshll.u32 [#allocation4], 4
          %s107 = int_to_ptr.vmem [resolvable:$true] %s106
          %112 = dma.hbm_to_vmem [thread:$0]  %s1, 256, %s107, [#allocation5], 128, 128, 8
        $region16: #{tpu_custom_call.1} parent=11 // pred_fallthru
          _
      $region12: #{tpu_custom_call.1} parent=5 // pred_fallthru
        _
      %p113 = scmp.lt.s32.totalorder %s12, 2
      // Predicated region
      $region17: #{tpu_custom_call.1} parent=5 // pred_check
        %p114 = pneg %p113
      $region18: #{tpu_custom_call.1} parent=5 // pred_check_branch
        %116 = sbr.rel (%p114) target = $region20
      $region19: #{tpu_custom_call.1} parent=5 // pred_region
        // Predicated region
        $region21: #{tpu_custom_call.1} parent=19 // pred_check
          %p117 = pneg %p32
        $region22: #{tpu_custom_call.1} parent=19 // pred_check_branch
          %119 = sbr.rel (%p117) target = $region24
        $region23: #{tpu_custom_call.1} parent=19 // pred_region
          %s120 = sand.u32 %s22, 1
          %s121 = scalar_lea.sflag [#allocation3], %s120
          %s122 = sand.u32 %s22, 1
          %s123 = smul.addr %s122, 64
          %s124 = scalar_lea.vmem [#allocation2], %s123
          %s125 = smul.u32 4, %s12
          %s127 = ssub.s32 1024, 1024
          %128 = vsyncadd %s121, %s127
          %s129 = smul.addr %s125, 2
          %s130 = smul.addr %s129, 128
          %s131 = scalar_lea.hbm %s0, %s130
          %s132 = sshll.u32 %s124, 4
          %s133 = int_to_ptr.vmem [resolvable:$true] %s132
          %138 = dma.hbm_to_vmem [thread:$0]  %s131, 1024, %s133, %s121, 128, 128, 8
        $region24: #{tpu_custom_call.1} parent=19 // pred_fallthru
          _
      $region20: #{tpu_custom_call.1} parent=5 // pred_fallthru
        _
      %p139 = scmp.le.s32.totalorder 1, %s12
      %p140 = scmp.lt.s32.totalorder %s12, 3
      %p141 = pnand %p139, %p140
      %p142 = pneg %p141
      // Predicated region
      $region25: #{tpu_custom_call.1} parent=5 // pred_check
        _
      $region26: #{tpu_custom_call.1} parent=5 // pred_check_branch
        %144 = sbr.rel (%p141) target = $region28
      $region27: #{tpu_custom_call.1} parent=5 // pred_region
        %s145 = ssub.s32 %s12, 1
        %s146 = sand.u32 %s25, 1
        %s147 = scalar_lea.sflag [#allocation3], %s146
        %s148 = sand.u32 %s25, 1
        %s149 = smul.addr %s148, 64
        %s150 = scalar_lea.vmem [#allocation2], %s149
        // Predicated region
        $region29: #{tpu_custom_call.1} parent=27 // pred_check
          %p151 = pneg %p38
        $region30: #{tpu_custom_call.1} parent=27 // pred_check_branch
          %153 = sbr.rel (%p151) target = $region32
        $region31: #{tpu_custom_call.1} parent=27 // pred_region
          %154 = dma.done %s147, 1024
        $region32: #{tpu_custom_call.1} parent=27 // pred_fallthru
          _
        // Predicated region
        $region33: #{tpu_custom_call.1} parent=27 // pred_check
          %p155 = pneg %p59
        $region34: #{tpu_custom_call.1} parent=27 // pred_check_branch
          %157 = sbr.rel (%p155) target = $region36
        $region35: #{tpu_custom_call.1} parent=27 // pred_region
          %158 = dma.done [#allocation5], 256
        $region36: #{tpu_custom_call.1} parent=27 // pred_fallthru
          _
        %s159 = sand.u32 %s25, 1
        %s160 = scalar_lea.sflag [#allocation3], %s159
        %s161 = sand.u32 %s25, 1
        %s162 = smul.addr %s161, 64
        %s163 = scalar_lea.vmem [#allocation2], %s162
        %p164 = pneg %p38
        %p165 = pneg %p35
        %p166 = pneg %p59
        %p167 = pneg %p56
        %p168 = pneg %p85
        %p169 = pneg %p82
        %s170 = smul.u32 4, %s17
        %p171 = scmp.lt.s32.totalorder %s170, 7
        %s172 = scalar_select %p171, %s170, 7
        %s173 = smul.addr %s172, 2
        %s174 = smul.addr %s173, 8
        %s175 = scalar_lea.vmem %s2, %s174
        %s176 = smul.u32 4, %s17
        %s177 = smul.u32 4, %s17
        %p178 = scmp.lt.s32.totalorder %s177, 7
        %s179 = scalar_select %p178, %s177, 7
        %s180 = smul.addr %s179, 2
        %s181 = smul.addr %s180, 8
        %s182 = scalar_lea.vmem %s2, %s181
        %s183 = smul.u32 4, %s17
        %v184 = vld [vmem:[#allocation4] sm:$0xff]
        %v185 = vld [vmem:[#allocation4 + $0x8] sm:$0xff]
        %v186 = vld [vmem:[%s150] sm:$0x3]
        %v187 = vld [vmem:[%s150 + $0x10] sm:$0x3]
        %v188 = vld [vmem:[%s150 + $0x20] sm:$0x3]
        %v189 = vld [vmem:[%s150 + $0x30] sm:$0x3]
        %vm190 = vcmask 123904
        %v191 = vsel %vm190, %v186, 0.0
        %v192 = vrot.slane %v191, 4
        %v193 = vadd.f32 %v191, %v192
        %v194 = vrot.slane %v193, 2
        %v195 = vadd.f32 %v193, %v194
        %v196 = vrot.slane %v195, 1
        %v197 = vadd.f32 %v195, %v196
        %v198 = vsel %vm190, %v187, 0.0
        %v199 = vrot.slane %v198, 4
        %v200 = vadd.f32 %v198, %v199
        %v201 = vrot.slane %v200, 2
        %v202 = vadd.f32 %v200, %v201
        %v203 = vrot.slane %v202, 1
        %v204 = vadd.f32 %v202, %v203
        %v205 = vsel %vm190, %v188, 0.0
        %v206 = vrot.slane %v205, 4
        %v207 = vadd.f32 %v205, %v206
        %v208 = vrot.slane %v207, 2
        %v209 = vadd.f32 %v207, %v208
        %v210 = vrot.slane %v209, 1
        %v211 = vadd.f32 %v209, %v210
        %v212 = vsel %vm190, %v189, 0.0
        %v213 = vrot.slane %v212, 4
        %v214 = vadd.f32 %v212, %v213
        %v215 = vrot.slane %v214, 2
        %v216 = vadd.f32 %v214, %v215
        %v217 = vrot.slane %v216, 1
        %v218 = vadd.f32 %v216, %v217
        %vm223 = vcmask 1041409
        %v224 = vsel %vm223, %v204, %v197
        %vm225 = vcmask 1042434
        %v226 = vsel %vm225, %v211, %v224
        %vm227 = vcmask 1043459
        %v228 = vsel %vm227, %v218, %v226
        %vm229 = vcmask 130048
        %v230 = vsel %vm229, %v228, 0
        %232 = vmatprep.subr.mxu0 0.0
        %233 = vmatpush1.msra.mxu0 %v184
        %234 = vmatprep.subr.mxu0 0.0
        %235 = vmatpush1.msra.mxu0 %v185
        %236 = vmatprep.subr.mxu0 0.0
        %237 = vmatpush1.msra.mxu0 0.0
        %238 = vmatprep.subr.mxu0 0.0
        %239 = vmatpush1.msra.mxu0 0.0
        %240 = vmatprep.subr.mxu0 0.0
        %241 = vmatpush1.msra.mxu0 0.0
        %242 = vmatprep.subr.mxu0 0.0
        %243 = vmatpush1.msra.mxu0 0.0
        %244 = vmatprep.subr.mxu0 0.0
        %245 = vmatpush1.msra.mxu0 0.0
        %246 = vmatprep.subr.mxu0 0.0
        %247 = vmatpush1.msra.mxu0 0.0
        %248 = vmatprep.subr.mxu0 0.0
        %249 = vmatpush1.msra.mxu0 0.0
        %250 = vmatprep.subr.mxu0 0.0
        %251 = vmatpush1.msra.mxu0 0.0
        %252 = vmatprep.subr.mxu0 0.0
        %253 = vmatpush1.msra.mxu0 0.0
        %254 = vmatprep.subr.mxu0 0.0
        %255 = vmatpush1.msra.mxu0 0.0
        %256 = vmatprep.subr.mxu0 0.0
        %257 = vmatpush1.msra.mxu0 0.0
        %258 = vmatprep.subr.mxu0 0.0
        %259 = vmatpush1.msra.mxu0 0.0
        %260 = vmatprep.subr.mxu0 0.0
        %261 = vmatpush1.msra.mxu0 0.0
        %262 = vmatprep.subr.mxu0 0.0
        %263 = vmatpush1.msra.mxu0 0.0
        %264 = vmatprep.subr.mxu0 0.0
        %265 = vmatpush1.msra.mxu0 0.0
        %266 = vmatprep.subr.mxu0 0.0
        %267 = vmatpush1.msra.mxu0 0.0
        %268 = vmatprep.subr.mxu0 0.0
        %269 = vmatpush1.msra.mxu0 0.0
        %270 = vmatprep.subr.mxu0 0.0
        %271 = vmatpush1.msra.mxu0 0.0
        %272 = vmatprep.subr.mxu0 0.0
        %273 = vmatpush1.msra.mxu0 0.0
        %274 = vmatprep.subr.mxu0 0.0
        %275 = vmatpush1.msra.mxu0 0.0
        %276 = vmatprep.subr.mxu0 0.0
        %277 = vmatpush1.msra.mxu0 0.0
        %278 = vmatprep.subr.mxu0 0.0
        %279 = vmatpush1.msra.mxu0 0.0
        %280 = vmatprep.subr.mxu0 0.0
        %281 = vmatpush1.msra.mxu0 0.0
        %282 = vmatprep.subr.mxu0 0.0
        %283 = vmatpush1.msra.mxu0 0.0
        %284 = vmatprep.subr.mxu0 0.0
        %285 = vmatpush1.msra.mxu0 0.0
        %286 = vmatprep.subr.mxu0 0.0
        %287 = vmatpush1.msra.mxu0 0.0
        %288 = vmatprep.subr.mxu0 0.0
        %289 = vmatpush1.msra.mxu0 0.0
        %290 = vmatprep.subr.mxu0 0.0
        %291 = vmatpush1.msra.mxu0 0.0
        %292 = vmatprep.subr.mxu0 0.0
        %293 = vmatpush1.msra.mxu0 0.0
        %294 = vmatprep.subr.mxu0 0.0
        %295 = vmatpush1.msra.mxu0 0.0
        %296 = vmatprep.mubr.f32.mxu0 0.0
        %297 = vmatmul.mubr.f32.gmra.mrb[0].mxu0 %v230
        %v298 = vpop.f32.mrb[0].mxu0
        %v299 = vadd.f32 0.0, %v298
        %v300 = vpop.f32.mrb[0].mxu0
        %301 = vdwg.mxu0
        %v302 = vmul.f32 %v299, 0.5
        %v305 = vunpack.c.l.s4 1966171168
        %v306 = vunpack.c.0.s8 %v305
        %v307 = vlaneseq
        %v308 = vshrl.u32 %v307, 7
        %v309 = vsub.s32 %v306, %v308
        %v310 = vrot.slane %v302, %v309
        %v311 = vcombine.high %v310, %v310
        %v313 = vunpack.c.l.s4 1966171168
        %v314 = vunpack.c.0.s8 %v313
        %v315 = vlaneseq
        %v316 = vshrl.u32 %v315, 7
        %v317 = vsub.s32 %v314, %v316
        %v318 = vrot.slane %v310, %v317
        %v320 = vunpack.c.l.s4 1966171168
        %v321 = vunpack.c.0.s8 %v320
        %v322 = vlaneseq
        %v323 = vshrl.u32 %v322, 7
        %v324 = vsub.s32 %v321, %v323
        %v325 = vrot.slane %v311, %v324
        %v326 = vcombine.high %v318, %v318
        %v327 = vcombine.high %v325, %v325
        %332 = vst [vmem:[%s182] sm:$0x1] %v318
        %333 = vst [vmem:[%s182 + $0x10] sm:$0x1] %v325
        %334 = vst [vmem:[%s182 + $0x20] sm:$0x1] %v326
        %335 = vst [vmem:[%s182 + $0x30] sm:$0x1] %v327
        %v336 = vld [vmem:[%s150 + $0x1] sm:$0x3]
        %v337 = vld [vmem:[%s150 + $0x11] sm:$0x3]
        %v338 = vld [vmem:[%s150 + $0x21] sm:$0x3]
        %v339 = vld [vmem:[%s150 + $0x31] sm:$0x3]
        %v340 = vsel %vm190, %v336, 0.0
        %v341 = vrot.slane %v340, 4
        %v342 = vadd.f32 %v340, %v341
        %v343 = vrot.slane %v342, 2
        %v344 = vadd.f32 %v342, %v343
        %v345 = vrot.slane %v344, 1
        %v346 = vadd.f32 %v344, %v345
        %v347 = vsel %vm190, %v337, 0.0
        %v348 = vrot.slane %v347, 4
        %v349 = vadd.f32 %v347, %v348
        %v350 = vrot.slane %v349, 2
        %v351 = vadd.f32 %v349, %v350
        %v352 = vrot.slane %v351, 1
        %v353 = vadd.f32 %v351, %v352
        %v354 = vsel %vm190, %v338, 0.0
        %v355 = vrot.slane %v354, 4
        %v356 = vadd.f32 %v354, %v355
        %v357 = vrot.slane %v356, 2
        %v358 = vadd.f32 %v356, %v357
        %v359 = vrot.slane %v358, 1
        %v360 = vadd.f32 %v358, %v359
        %v361 = vsel %vm190, %v339, 0.0
        %v362 = vrot.slane %v361, 4
        %v363 = vadd.f32 %v361, %v362
        %v364 = vrot.slane %v363, 2
        %v365 = vadd.f32 %v363, %v364
        %v366 = vrot.slane %v365, 1
        %v367 = vadd.f32 %v365, %v366
        %v372 = vsel %vm223, %v353, %v346
        %v373 = vsel %vm225, %v360, %v372
        %v374 = vsel %vm227, %v367, %v373
        %v375 = vsel %vm229, %v374, 0
        %377 = vmatprep.subr.mxu0 0.0
        %378 = vmatpush1.msra.mxu0 %v184
        %379 = vmatprep.subr.mxu0 0.0
        %380 = vmatpush1.msra.mxu0 %v185
        %381 = vmatprep.subr.mxu0 0.0
        %382 = vmatpush1.msra.mxu0 0.0
        %383 = vmatprep.subr.mxu0 0.0
        %384 = vmatpush1.msra.mxu0 0.0
        %385 = vmatprep.subr.mxu0 0.0
        %386 = vmatpush1.msra.mxu0 0.0
        %387 = vmatprep.subr.mxu0 0.0
        %388 = vmatpush1.msra.mxu0 0.0
        %389 = vmatprep.subr.mxu0 0.0
        %390 = vmatpush1.msra.mxu0 0.0
        %391 = vmatprep.subr.mxu0 0.0
        %392 = vmatpush1.msra.mxu0 0.0
        %393 = vmatprep.subr.mxu0 0.0
        %394 = vmatpush1.msra.mxu0 0.0
        %395 = vmatprep.subr.mxu0 0.0
        %396 = vmatpush1.msra.mxu0 0.0
        %397 = vmatprep.subr.mxu0 0.0
        %398 = vmatpush1.msra.mxu0 0.0
        %399 = vmatprep.subr.mxu0 0.0
        %400 = vmatpush1.msra.mxu0 0.0
        %401 = vmatprep.subr.mxu0 0.0
        %402 = vmatpush1.msra.mxu0 0.0
        %403 = vmatprep.subr.mxu0 0.0
        %404 = vmatpush1.msra.mxu0 0.0
        %405 = vmatprep.subr.mxu0 0.0
        %406 = vmatpush1.msra.mxu0 0.0
        %407 = vmatprep.subr.mxu0 0.0
        %408 = vmatpush1.msra.mxu0 0.0
        %409 = vmatprep.subr.mxu0 0.0
        %410 = vmatpush1.msra.mxu0 0.0
        %411 = vmatprep.subr.mxu0 0.0
        %412 = vmatpush1.msra.mxu0 0.0
        %413 = vmatprep.subr.mxu0 0.0
        %414 = vmatpush1.msra.mxu0 0.0
        %415 = vmatprep.subr.mxu0 0.0
        %416 = vmatpush1.msra.mxu0 0.0
        %417 = vmatprep.subr.mxu0 0.0
        %418 = vmatpush1.msra.mxu0 0.0
        %419 = vmatprep.subr.mxu0 0.0
        %420 = vmatpush1.msra.mxu0 0.0
        %421 = vmatprep.subr.mxu0 0.0
        %422 = vmatpush1.msra.mxu0 0.0
        %423 = vmatprep.subr.mxu0 0.0
        %424 = vmatpush1.msra.mxu0 0.0
        %425 = vmatprep.subr.mxu0 0.0
        %426 = vmatpush1.msra.mxu0 0.0
        %427 = vmatprep.subr.mxu0 0.0
        %428 = vmatpush1.msra.mxu0 0.0
        %429 = vmatprep.subr.mxu0 0.0
        %430 = vmatpush1.msra.mxu0 0.0
        %431 = vmatprep.subr.mxu0 0.0
        %432 = vmatpush1.msra.mxu0 0.0
        %433 = vmatprep.subr.mxu0 0.0
        %434 = vmatpush1.msra.mxu0 0.0
        %435 = vmatprep.subr.mxu0 0.0
        %436 = vmatpush1.msra.mxu0 0.0
        %437 = vmatprep.subr.mxu0 0.0
        %438 = vmatpush1.msra.mxu0 0.0
        %439 = vmatprep.subr.mxu0 0.0
        %440 = vmatpush1.msra.mxu0 0.0
        %441 = vmatprep.mubr.f32.mxu0 0.0
        %442 = vmatmul.mubr.f32.gmra.mrb[0].mxu0 %v375
        %v443 = vpop.f32.mrb[0].mxu0
        %v444 = vadd.f32 0.0, %v443
        %v445 = vpop.f32.mrb[0].mxu0
        %446 = vdwg.mxu0
        %v447 = vmul.f32 %v444, 0.5
        %v450 = vunpack.c.l.s4 1966171168
        %v451 = vunpack.c.0.s8 %v450
        %v452 = vlaneseq
        %v453 = vshrl.u32 %v452, 7
        %v454 = vsub.s32 %v451, %v453
        %v455 = vrot.slane %v447, %v454
        %v456 = vcombine.high %v455, %v455
        %v458 = vunpack.c.l.s4 1966171168
        %v459 = vunpack.c.0.s8 %v458
        %v460 = vlaneseq
        %v461 = vshrl.u32 %v460, 7
        %v462 = vsub.s32 %v459, %v461
        %v463 = vrot.slane %v455, %v462
        %v465 = vunpack.c.l.s4 1966171168
        %v466 = vunpack.c.0.s8 %v465
        %v467 = vlaneseq
        %v468 = vshrl.u32 %v467, 7
        %v469 = vsub.s32 %v466, %v468
        %v470 = vrot.slane %v456, %v469
        %v471 = vcombine.high %v463, %v463
        %v472 = vcombine.high %v470, %v470
        %477 = vst [vmem:[%s182 + $0x1] sm:$0x1] %v463
        %478 = vst [vmem:[%s182 + $0x11] sm:$0x1] %v470
        %479 = vst [vmem:[%s182 + $0x21] sm:$0x1] %v471
        %480 = vst [vmem:[%s182 + $0x31] sm:$0x1] %v472
        %v481 = vld [vmem:[%s150 + $0x2] sm:$0x3]
        %v482 = vld [vmem:[%s150 + $0x12] sm:$0x3]
        %v483 = vld [vmem:[%s150 + $0x22] sm:$0x3]
        %v484 = vld [vmem:[%s150 + $0x32] sm:$0x3]
        %v485 = vsel %vm190, %v481, 0.0
        %v486 = vrot.slane %v485, 4
        %v487 = vadd.f32 %v485, %v486
        %v488 = vrot.slane %v487, 2
        %v489 = vadd.f32 %v487, %v488
        %v490 = vrot.slane %v489, 1
        %v491 = vadd.f32 %v489, %v490
        %v492 = vsel %vm190, %v482, 0.0
        %v493 = vrot.slane %v492, 4
        %v494 = vadd.f32 %v492, %v493
        %v495 = vrot.slane %v494, 2
        %v496 = vadd.f32 %v494, %v495
        %v497 = vrot.slane %v496, 1
        %v498 = vadd.f32 %v496, %v497
        %v499 = vsel %vm190, %v483, 0.0
        %v500 = vrot.slane %v499, 4
        %v501 = vadd.f32 %v499, %v500
        %v502 = vrot.slane %v501, 2
        %v503 = vadd.f32 %v501, %v502
        %v504 = vrot.slane %v503, 1
        %v505 = vadd.f32 %v503, %v504
        %v506 = vsel %vm190, %v484, 0.0
        %v507 = vrot.slane %v506, 4
        %v508 = vadd.f32 %v506, %v507
        %v509 = vrot.slane %v508, 2
        %v510 = vadd.f32 %v508, %v509
        %v511 = vrot.slane %v510, 1
        %v512 = vadd.f32 %v510, %v511
        %v517 = vsel %vm223, %v498, %v491
        %v518 = vsel %vm225, %v505, %v517
        %v519 = vsel %vm227, %v512, %v518
        %v520 = vsel %vm229, %v519, 0
        %522 = vmatprep.subr.mxu0 0.0
        %523 = vmatpush1.msra.mxu0 %v184
        %524 = vmatprep.subr.mxu0 0.0
        %525 = vmatpush1.msra.mxu0 %v185
        %526 = vmatprep.subr.mxu0 0.0
        %527 = vmatpush1.msra.mxu0 0.0
        %528 = vmatprep.subr.mxu0 0.0
        %529 = vmatpush1.msra.mxu0 0.0
        %530 = vmatprep.subr.mxu0 0.0
        %531 = vmatpush1.msra.mxu0 0.0
        %532 = vmatprep.subr.mxu0 0.0
        %533 = vmatpush1.msra.mxu0 0.0
        %534 = vmatprep.subr.mxu0 0.0
        %535 = vmatpush1.msra.mxu0 0.0
        %536 = vmatprep.subr.mxu0 0.0
        %537 = vmatpush1.msra.mxu0 0.0
        %538 = vmatprep.subr.mxu0 0.0
        %539 = vmatpush1.msra.mxu0 0.0
        %540 = vmatprep.subr.mxu0 0.0
        %541 = vmatpush1.msra.mxu0 0.0
        %542 = vmatprep.subr.mxu0 0.0
        %543 = vmatpush1.msra.mxu0 0.0
        %544 = vmatprep.subr.mxu0 0.0
        %545 = vmatpush1.msra.mxu0 0.0
        %546 = vmatprep.subr.mxu0 0.0
        %547 = vmatpush1.msra.mxu0 0.0
        %548 = vmatprep.subr.mxu0 0.0
        %549 = vmatpush1.msra.mxu0 0.0
        %550 = vmatprep.subr.mxu0 0.0
        %551 = vmatpush1.msra.mxu0 0.0
        %552 = vmatprep.subr.mxu0 0.0
        %553 = vmatpush1.msra.mxu0 0.0
        %554 = vmatprep.subr.mxu0 0.0
        %555 = vmatpush1.msra.mxu0 0.0
        %556 = vmatprep.subr.mxu0 0.0
        %557 = vmatpush1.msra.mxu0 0.0
        %558 = vmatprep.subr.mxu0 0.0
        %559 = vmatpush1.msra.mxu0 0.0
        %560 = vmatprep.subr.mxu0 0.0
        %561 = vmatpush1.msra.mxu0 0.0
        %562 = vmatprep.subr.mxu0 0.0
        %563 = vmatpush1.msra.mxu0 0.0
        %564 = vmatprep.subr.mxu0 0.0
        %565 = vmatpush1.msra.mxu0 0.0
        %566 = vmatprep.subr.mxu0 0.0
        %567 = vmatpush1.msra.mxu0 0.0
        %568 = vmatprep.subr.mxu0 0.0
        %569 = vmatpush1.msra.mxu0 0.0
        %570 = vmatprep.subr.mxu0 0.0
        %571 = vmatpush1.msra.mxu0 0.0
        %572 = vmatprep.subr.mxu0 0.0
        %573 = vmatpush1.msra.mxu0 0.0
        %574 = vmatprep.subr.mxu0 0.0
        %575 = vmatpush1.msra.mxu0 0.0
        %576 = vmatprep.subr.mxu0 0.0
        %577 = vmatpush1.msra.mxu0 0.0
        %578 = vmatprep.subr.mxu0 0.0
        %579 = vmatpush1.msra.mxu0 0.0
        %580 = vmatprep.subr.mxu0 0.0
        %581 = vmatpush1.msra.mxu0 0.0
        %582 = vmatprep.subr.mxu0 0.0
        %583 = vmatpush1.msra.mxu0 0.0
        %584 = vmatprep.subr.mxu0 0.0
        %585 = vmatpush1.msra.mxu0 0.0
        %586 = vmatprep.mubr.f32.mxu0 0.0
        %587 = vmatmul.mubr.f32.gmra.mrb[0].mxu0 %v520
        %v588 = vpop.f32.mrb[0].mxu0
        %v589 = vadd.f32 0.0, %v588
        %v590 = vpop.f32.mrb[0].mxu0
        %591 = vdwg.mxu0
        %v592 = vmul.f32 %v589, 0.5
        %v595 = vunpack.c.l.s4 1966171168
        %v596 = vunpack.c.0.s8 %v595
        %v597 = vlaneseq
        %v598 = vshrl.u32 %v597, 7
        %v599 = vsub.s32 %v596, %v598
        %v600 = vrot.slane %v592, %v599
        %v601 = vcombine.high %v600, %v600
        %v603 = vunpack.c.l.s4 1966171168
        %v604 = vunpack.c.0.s8 %v603
        %v605 = vlaneseq
        %v606 = vshrl.u32 %v605, 7
        %v607 = vsub.s32 %v604, %v606
        %v608 = vrot.slane %v600, %v607
        %v610 = vunpack.c.l.s4 1966171168
        %v611 = vunpack.c.0.s8 %v610
        %v612 = vlaneseq
        %v613 = vshrl.u32 %v612, 7
        %v614 = vsub.s32 %v611, %v613
        %v615 = vrot.slane %v601, %v614
        %v616 = vcombine.high %v608, %v608
        %v617 = vcombine.high %v615, %v615
        %622 = vst [vmem:[%s182 + $0x2] sm:$0x1] %v608
        %623 = vst [vmem:[%s182 + $0x12] sm:$0x1] %v615
        %624 = vst [vmem:[%s182 + $0x22] sm:$0x1] %v616
        %625 = vst [vmem:[%s182 + $0x32] sm:$0x1] %v617
        %v626 = vld [vmem:[%s150 + $0x3] sm:$0x3]
        %v627 = vld [vmem:[%s150 + $0x13] sm:$0x3]
        %v628 = vld [vmem:[%s150 + $0x23] sm:$0x3]
        %v629 = vld [vmem:[%s150 + $0x33] sm:$0x3]
        %v630 = vsel %vm190, %v626, 0.0
        %v631 = vrot.slane %v630, 4
        %v632 = vadd.f32 %v630, %v631
        %v633 = vrot.slane %v632, 2
        %v634 = vadd.f32 %v632, %v633
        %v635 = vrot.slane %v634, 1
        %v636 = vadd.f32 %v634, %v635
        %v637 = vsel %vm190, %v627, 0.0
        %v638 = vrot.slane %v637, 4
        %v639 = vadd.f32 %v637, %v638
        %v640 = vrot.slane %v639, 2
        %v641 = vadd.f32 %v639, %v640
        %v642 = vrot.slane %v641, 1
        %v643 = vadd.f32 %v641, %v642
        %v644 = vsel %vm190, %v628, 0.0
        %v645 = vrot.slane %v644, 4
        %v646 = vadd.f32 %v644, %v645
        %v647 = vrot.slane %v646, 2
        %v648 = vadd.f32 %v646, %v647
        %v649 = vrot.slane %v648, 1
        %v650 = vadd.f32 %v648, %v649
        %v651 = vsel %vm190, %v629, 0.0
        %v652 = vrot.slane %v651, 4
        %v653 = vadd.f32 %v651, %v652
        %v654 = vrot.slane %v653, 2
        %v655 = vadd.f32 %v653, %v654
        %v656 = vrot.slane %v655, 1
        %v657 = vadd.f32 %v655, %v656
        %v662 = vsel %vm223, %v643, %v636
        %v663 = vsel %vm225, %v650, %v662
        %v664 = vsel %vm227, %v657, %v663
        %v665 = vsel %vm229, %v664, 0
        %667 = vmatprep.subr.mxu0 0.0
        %668 = vmatpush1.msra.mxu0 %v184
        %669 = vmatprep.subr.mxu0 0.0
        %670 = vmatpush1.msra.mxu0 %v185
        %671 = vmatprep.subr.mxu0 0.0
        %672 = vmatpush1.msra.mxu0 0.0
        %673 = vmatprep.subr.mxu0 0.0
        %674 = vmatpush1.msra.mxu0 0.0
        %675 = vmatprep.subr.mxu0 0.0
        %676 = vmatpush1.msra.mxu0 0.0
        %677 = vmatprep.subr.mxu0 0.0
        %678 = vmatpush1.msra.mxu0 0.0
        %679 = vmatprep.subr.mxu0 0.0
        %680 = vmatpush1.msra.mxu0 0.0
        %681 = vmatprep.subr.mxu0 0.0
        %682 = vmatpush1.msra.mxu0 0.0
        %683 = vmatprep.subr.mxu0 0.0
        %684 = vmatpush1.msra.mxu0 0.0
        %685 = vmatprep.subr.mxu0 0.0
        %686 = vmatpush1.msra.mxu0 0.0
        %687 = vmatprep.subr.mxu0 0.0
        %688 = vmatpush1.msra.mxu0 0.0
        %689 = vmatprep.subr.mxu0 0.0
        %690 = vmatpush1.msra.mxu0 0.0
        %691 = vmatprep.subr.mxu0 0.0
        %692 = vmatpush1.msra.mxu0 0.0
        %693 = vmatprep.subr.mxu0 0.0
        %694 = vmatpush1.msra.mxu0 0.0
        %695 = vmatprep.subr.mxu0 0.0
        %696 = vmatpush1.msra.mxu0 0.0
        %697 = vmatprep.subr.mxu0 0.0
        %698 = vmatpush1.msra.mxu0 0.0
        %699 = vmatprep.subr.mxu0 0.0
        %700 = vmatpush1.msra.mxu0 0.0
        %701 = vmatprep.subr.mxu0 0.0
        %702 = vmatpush1.msra.mxu0 0.0
        %703 = vmatprep.subr.mxu0 0.0
        %704 = vmatpush1.msra.mxu0 0.0
        %705 = vmatprep.subr.mxu0 0.0
        %706 = vmatpush1.msra.mxu0 0.0
        %707 = vmatprep.subr.mxu0 0.0
        %708 = vmatpush1.msra.mxu0 0.0
        %709 = vmatprep.subr.mxu0 0.0
        %710 = vmatpush1.msra.mxu0 0.0
        %711 = vmatprep.subr.mxu0 0.0
        %712 = vmatpush1.msra.mxu0 0.0
        %713 = vmatprep.subr.mxu0 0.0
        %714 = vmatpush1.msra.mxu0 0.0
        %715 = vmatprep.subr.mxu0 0.0
        %716 = vmatpush1.msra.mxu0 0.0
        %717 = vmatprep.subr.mxu0 0.0
        %718 = vmatpush1.msra.mxu0 0.0
        %719 = vmatprep.subr.mxu0 0.0
        %720 = vmatpush1.msra.mxu0 0.0
        %721 = vmatprep.subr.mxu0 0.0
        %722 = vmatpush1.msra.mxu0 0.0
        %723 = vmatprep.subr.mxu0 0.0
        %724 = vmatpush1.msra.mxu0 0.0
        %725 = vmatprep.subr.mxu0 0.0
        %726 = vmatpush1.msra.mxu0 0.0
        %727 = vmatprep.subr.mxu0 0.0
        %728 = vmatpush1.msra.mxu0 0.0
        %729 = vmatprep.subr.mxu0 0.0
        %730 = vmatpush1.msra.mxu0 0.0
        %731 = vmatprep.mubr.f32.mxu0 0.0
        %732 = vmatmul.mubr.f32.gmra.mrb[0].mxu0 %v665
        %v733 = vpop.f32.mrb[0].mxu0
        %v734 = vadd.f32 0.0, %v733
        %v735 = vpop.f32.mrb[0].mxu0
        %736 = vdwg.mxu0
        %v737 = vmul.f32 %v734, 0.5
        %v740 = vunpack.c.l.s4 1966171168
        %v741 = vunpack.c.0.s8 %v740
        %v742 = vlaneseq
        %v743 = vshrl.u32 %v742, 7
        %v744 = vsub.s32 %v741, %v743
        %v745 = vrot.slane %v737, %v744
        %v746 = vcombine.high %v745, %v745
        %v748 = vunpack.c.l.s4 1966171168
        %v749 = vunpack.c.0.s8 %v748
        %v750 = vlaneseq
        %v751 = vshrl.u32 %v750, 7
        %v752 = vsub.s32 %v749, %v751
        %v753 = vrot.slane %v745, %v752
        %v755 = vunpack.c.l.s4 1966171168
        %v756 = vunpack.c.0.s8 %v755
        %v757 = vlaneseq
        %v758 = vshrl.u32 %v757, 7
        %v759 = vsub.s32 %v756, %v758
        %v760 = vrot.slane %v746, %v759
        %v761 = vcombine.high %v753, %v753
        %v762 = vcombine.high %v760, %v760
        %767 = vst [vmem:[%s182 + $0x3] sm:$0x1] %v753
        %768 = vst [vmem:[%s182 + $0x13] sm:$0x1] %v760
        %769 = vst [vmem:[%s182 + $0x23] sm:$0x1] %v761
        %770 = vst [vmem:[%s182 + $0x33] sm:$0x1] %v762
        %v771 = vld [vmem:[%s150 + $0x4] sm:$0x3]
        %v772 = vld [vmem:[%s150 + $0x14] sm:$0x3]
        %v773 = vld [vmem:[%s150 + $0x24] sm:$0x3]
        %v774 = vld [vmem:[%s150 + $0x34] sm:$0x3]
        %v775 = vsel %vm190, %v771, 0.0
        %v776 = vrot.slane %v775, 4
        %v777 = vadd.f32 %v775, %v776
        %v778 = vrot.slane %v777, 2
        %v779 = vadd.f32 %v777, %v778
        %v780 = vrot.slane %v779, 1
        %v781 = vadd.f32 %v779, %v780
        %v782 = vsel %vm190, %v772, 0.0
        %v783 = vrot.slane %v782, 4
        %v784 = vadd.f32 %v782, %v783
        %v785 = vrot.slane %v784, 2
        %v786 = vadd.f32 %v784, %v785
        %v787 = vrot.slane %v786, 1
        %v788 = vadd.f32 %v786, %v787
        %v789 = vsel %vm190, %v773, 0.0
        %v790 = vrot.slane %v789, 4
        %v791 = vadd.f32 %v789, %v790
        %v792 = vrot.slane %v791, 2
        %v793 = vadd.f32 %v791, %v792
        %v794 = vrot.slane %v793, 1
        %v795 = vadd.f32 %v793, %v794
        %v796 = vsel %vm190, %v774, 0.0
        %v797 = vrot.slane %v796, 4
        %v798 = vadd.f32 %v796, %v797
        %v799 = vrot.slane %v798, 2
        %v800 = vadd.f32 %v798, %v799
        %v801 = vrot.slane %v800, 1
        %v802 = vadd.f32 %v800, %v801
        %v807 = vsel %vm223, %v788, %v781
        %v808 = vsel %vm225, %v795, %v807
        %v809 = vsel %vm227, %v802, %v808
        %v810 = vsel %vm229, %v809, 0
        %812 = vmatprep.subr.mxu0 0.0
        %813 = vmatpush1.msra.mxu0 %v184
        %814 = vmatprep.subr.mxu0 0.0
        %815 = vmatpush1.msra.mxu0 %v185
        %816 = vmatprep.subr.mxu0 0.0
        %817 = vmatpush1.msra.mxu0 0.0
        %818 = vmatprep.subr.mxu0 0.0
        %819 = vmatpush1.msra.mxu0 0.0
        %820 = vmatprep.subr.mxu0 0.0
        %821 = vmatpush1.msra.mxu0 0.0
        %822 = vmatprep.subr.mxu0 0.0
        %823 = vmatpush1.msra.mxu0 0.0
        %824 = vmatprep.subr.mxu0 0.0
        %825 = vmatpush1.msra.mxu0 0.0
        %826 = vmatprep.subr.mxu0 0.0
        %827 = vmatpush1.msra.mxu0 0.0
        %828 = vmatprep.subr.mxu0 0.0
        %829 = vmatpush1.msra.mxu0 0.0
        %830 = vmatprep.subr.mxu0 0.0
        %831 = vmatpush1.msra.mxu0 0.0
        %832 = vmatprep.subr.mxu0 0.0
        %833 = vmatpush1.msra.mxu0 0.0
        %834 = vmatprep.subr.mxu0 0.0
        %835 = vmatpush1.msra.mxu0 0.0
        %836 = vmatprep.subr.mxu0 0.0
        %837 = vmatpush1.msra.mxu0 0.0
        %838 = vmatprep.subr.mxu0 0.0
        %839 = vmatpush1.msra.mxu0 0.0
        %840 = vmatprep.subr.mxu0 0.0
        %841 = vmatpush1.msra.mxu0 0.0
        %842 = vmatprep.subr.mxu0 0.0
        %843 = vmatpush1.msra.mxu0 0.0
        %844 = vmatprep.subr.mxu0 0.0
        %845 = vmatpush1.msra.mxu0 0.0
        %846 = vmatprep.subr.mxu0 0.0
        %847 = vmatpush1.msra.mxu0 0.0
        %848 = vmatprep.subr.mxu0 0.0
        %849 = vmatpush1.msra.mxu0 0.0
        %850 = vmatprep.subr.mxu0 0.0
        %851 = vmatpush1.msra.mxu0 0.0
        %852 = vmatprep.subr.mxu0 0.0
        %853 = vmatpush1.msra.mxu0 0.0
        %854 = vmatprep.subr.mxu0 0.0
        %855 = vmatpush1.msra.mxu0 0.0
        %856 = vmatprep.subr.mxu0 0.0
        %857 = vmatpush1.msra.mxu0 0.0
        %858 = vmatprep.subr.mxu0 0.0
        %859 = vmatpush1.msra.mxu0 0.0
        %860 = vmatprep.subr.mxu0 0.0
        %861 = vmatpush1.msra.mxu0 0.0
        %862 = vmatprep.subr.mxu0 0.0
        %863 = vmatpush1.msra.mxu0 0.0
        %864 = vmatprep.subr.mxu0 0.0
        %865 = vmatpush1.msra.mxu0 0.0
        %866 = vmatprep.subr.mxu0 0.0
        %867 = vmatpush1.msra.mxu0 0.0
        %868 = vmatprep.subr.mxu0 0.0
        %869 = vmatpush1.msra.mxu0 0.0
        %870 = vmatprep.subr.mxu0 0.0
        %871 = vmatpush1.msra.mxu0 0.0
        %872 = vmatprep.subr.mxu0 0.0
        %873 = vmatpush1.msra.mxu0 0.0
        %874 = vmatprep.subr.mxu0 0.0
        %875 = vmatpush1.msra.mxu0 0.0
        %876 = vmatprep.mubr.f32.mxu0 0.0
        %877 = vmatmul.mubr.f32.gmra.mrb[0].mxu0 %v810
        %v878 = vpop.f32.mrb[0].mxu0
        %v879 = vadd.f32 0.0, %v878
        %v880 = vpop.f32.mrb[0].mxu0
        %881 = vdwg.mxu0
        %v882 = vmul.f32 %v879, 0.5
        %v885 = vunpack.c.l.s4 1966171168
        %v886 = vunpack.c.0.s8 %v885
        %v887 = vlaneseq
        %v888 = vshrl.u32 %v887, 7
        %v889 = vsub.s32 %v886, %v888
        %v890 = vrot.slane %v882, %v889
        %v891 = vcombine.high %v890, %v890
        %v893 = vunpack.c.l.s4 1966171168
        %v894 = vunpack.c.0.s8 %v893
        %v895 = vlaneseq
        %v896 = vshrl.u32 %v895, 7
        %v897 = vsub.s32 %v894, %v896
        %v898 = vrot.slane %v890, %v897
        %v900 = vunpack.c.l.s4 1966171168
        %v901 = vunpack.c.0.s8 %v900
        %v902 = vlaneseq
        %v903 = vshrl.u32 %v902, 7
        %v904 = vsub.s32 %v901, %v903
        %v905 = vrot.slane %v891, %v904
        %v906 = vcombine.high %v898, %v898
        %v907 = vcombine.high %v905, %v905
        %912 = vst [vmem:[%s182 + $0x4] sm:$0x1] %v898
        %913 = vst [vmem:[%s182 + $0x14] sm:$0x1] %v905
        %914 = vst [vmem:[%s182 + $0x24] sm:$0x1] %v906
        %915 = vst [vmem:[%s182 + $0x34] sm:$0x1] %v907
        %v916 = vld [vmem:[%s150 + $0x5] sm:$0x3]
        %v917 = vld [vmem:[%s150 + $0x15] sm:$0x3]
        %v918 = vld [vmem:[%s150 + $0x25] sm:$0x3]
        %v919 = vld [vmem:[%s150 + $0x35] sm:$0x3]
        %v920 = vsel %vm190, %v916, 0.0
        %v921 = vrot.slane %v920, 4
        %v922 = vadd.f32 %v920, %v921
        %v923 = vrot.slane %v922, 2
        %v924 = vadd.f32 %v922, %v923
        %v925 = vrot.slane %v924, 1
        %v926 = vadd.f32 %v924, %v925
        %v927 = vsel %vm190, %v917, 0.0
        %v928 = vrot.slane %v927, 4
        %v929 = vadd.f32 %v927, %v928
        %v930 = vrot.slane %v929, 2
        %v931 = vadd.f32 %v929, %v930
        %v932 = vrot.slane %v931, 1
        %v933 = vadd.f32 %v931, %v932
        %v934 = vsel %vm190, %v918, 0.0
        %v935 = vrot.slane %v934, 4
        %v936 = vadd.f32 %v934, %v935
        %v937 = vrot.slane %v936, 2
        %v938 = vadd.f32 %v936, %v937
        %v939 = vrot.slane %v938, 1
        %v940 = vadd.f32 %v938, %v939
        %v941 = vsel %vm190, %v919, 0.0
        %v942 = vrot.slane %v941, 4
        %v943 = vadd.f32 %v941, %v942
        %v944 = vrot.slane %v943, 2
        %v945 = vadd.f32 %v943, %v944
        %v946 = vrot.slane %v945, 1
        %v947 = vadd.f32 %v945, %v946
        %v952 = vsel %vm223, %v933, %v926
        %v953 = vsel %vm225, %v940, %v952
        %v954 = vsel %vm227, %v947, %v953
        %v955 = vsel %vm229, %v954, 0
        %957 = vmatprep.subr.mxu0 0.0
        %958 = vmatpush1.msra.mxu0 %v184
        %959 = vmatprep.subr.mxu0 0.0
        %960 = vmatpush1.msra.mxu0 %v185
        %961 = vmatprep.subr.mxu0 0.0
        %962 = vmatpush1.msra.mxu0 0.0
        %963 = vmatprep.subr.mxu0 0.0
        %964 = vmatpush1.msra.mxu0 0.0
        %965 = vmatprep.subr.mxu0 0.0
        %966 = vmatpush1.msra.mxu0 0.0
        %967 = vmatprep.subr.mxu0 0.0
        %968 = vmatpush1.msra.mxu0 0.0
        %969 = vmatprep.subr.mxu0 0.0
        %970 = vmatpush1.msra.mxu0 0.0
        %971 = vmatprep.subr.mxu0 0.0
        %972 = vmatpush1.msra.mxu0 0.0
        %973 = vmatprep.subr.mxu0 0.0
        %974 = vmatpush1.msra.mxu0 0.0
        %975 = vmatprep.subr.mxu0 0.0
        %976 = vmatpush1.msra.mxu0 0.0
        %977 = vmatprep.subr.mxu0 0.0
        %978 = vmatpush1.msra.mxu0 0.0
        %979 = vmatprep.subr.mxu0 0.0
        %980 = vmatpush1.msra.mxu0 0.0
        %981 = vmatprep.subr.mxu0 0.0
        %982 = vmatpush1.msra.mxu0 0.0
        %983 = vmatprep.subr.mxu0 0.0
        %984 = vmatpush1.msra.mxu0 0.0
        %985 = vmatprep.subr.mxu0 0.0
        %986 = vmatpush1.msra.mxu0 0.0
        %987 = vmatprep.subr.mxu0 0.0
        %988 = vmatpush1.msra.mxu0 0.0
        %989 = vmatprep.subr.mxu0 0.0
        %990 = vmatpush1.msra.mxu0 0.0
        %991 = vmatprep.subr.mxu0 0.0
        %992 = vmatpush1.msra.mxu0 0.0
        %993 = vmatprep.subr.mxu0 0.0
        %994 = vmatpush1.msra.mxu0 0.0
        %995 = vmatprep.subr.mxu0 0.0
        %996 = vmatpush1.msra.mxu0 0.0
        %997 = vmatprep.subr.mxu0 0.0
        %998 = vmatpush1.msra.mxu0 0.0
        %999 = vmatprep.subr.mxu0 0.0
        %1000 = vmatpush1.msra.mxu0 0.0
        %1001 = vmatprep.subr.mxu0 0.0
        %1002 = vmatpush1.msra.mxu0 0.0
        %1003 = vmatprep.subr.mxu0 0.0
        %1004 = vmatpush1.msra.mxu0 0.0
        %1005 = vmatprep.subr.mxu0 0.0
        %1006 = vmatpush1.msra.mxu0 0.0
        %1007 = vmatprep.subr.mxu0 0.0
        %1008 = vmatpush1.msra.mxu0 0.0
        %1009 = vmatprep.subr.mxu0 0.0
        %1010 = vmatpush1.msra.mxu0 0.0
        %1011 = vmatprep.subr.mxu0 0.0
        %1012 = vmatpush1.msra.mxu0 0.0
        %1013 = vmatprep.subr.mxu0 0.0
        %1014 = vmatpush1.msra.mxu0 0.0
        %1015 = vmatprep.subr.mxu0 0.0
        %1016 = vmatpush1.msra.mxu0 0.0
        %1017 = vmatprep.subr.mxu0 0.0
        %1018 = vmatpush1.msra.mxu0 0.0
        %1019 = vmatprep.subr.mxu0 0.0
        %1020 = vmatpush1.msra.mxu0 0.0
        %1021 = vmatprep.mubr.f32.mxu0 0.0
        %1022 = vmatmul.mubr.f32.gmra.mrb[0].mxu0 %v955
        %v1023 = vpop.f32.mrb[0].mxu0
        %v1024 = vadd.f32 0.0, %v1023
        %v1025 = vpop.f32.mrb[0].mxu0
        %1026 = vdwg.mxu0
        %v1027 = vmul.f32 %v1024, 0.5
        %v1030 = vunpack.c.l.s4 1966171168
        %v1031 = vunpack.c.0.s8 %v1030
        %v1032 = vlaneseq
        %v1033 = vshrl.u32 %v1032, 7
        %v1034 = vsub.s32 %v1031, %v1033
        %v1035 = vrot.slane %v1027, %v1034
        %v1036 = vcombine.high %v1035, %v1035
        %v1038 = vunpack.c.l.s4 1966171168
        %v1039 = vunpack.c.0.s8 %v1038
        %v1040 = vlaneseq
        %v1041 = vshrl.u32 %v1040, 7
        %v1042 = vsub.s32 %v1039, %v1041
        %v1043 = vrot.slane %v1035, %v1042
        %v1045 = vunpack.c.l.s4 1966171168
        %v1046 = vunpack.c.0.s8 %v1045
        %v1047 = vlaneseq
        %v1048 = vshrl.u32 %v1047, 7
        %v1049 = vsub.s32 %v1046, %v1048
        %v1050 = vrot.slane %v1036, %v1049
        %v1051 = vcombine.high %v1043, %v1043
        %v1052 = vcombine.high %v1050, %v1050
        %1057 = vst [vmem:[%s182 + $0x5] sm:$0x1] %v1043
        %1058 = vst [vmem:[%s182 + $0x15] sm:$0x1] %v1050
        %1059 = vst [vmem:[%s182 + $0x25] sm:$0x1] %v1051
        %1060 = vst [vmem:[%s182 + $0x35] sm:$0x1] %v1052
        %v1061 = vld [vmem:[%s150 + $0x6] sm:$0x3]
        %v1062 = vld [vmem:[%s150 + $0x16] sm:$0x3]
        %v1063 = vld [vmem:[%s150 + $0x26] sm:$0x3]
        %v1064 = vld [vmem:[%s150 + $0x36] sm:$0x3]
        %v1065 = vsel %vm190, %v1061, 0.0
        %v1066 = vrot.slane %v1065, 4
        %v1067 = vadd.f32 %v1065, %v1066
        %v1068 = vrot.slane %v1067, 2
        %v1069 = vadd.f32 %v1067, %v1068
        %v1070 = vrot.slane %v1069, 1
        %v1071 = vadd.f32 %v1069, %v1070
        %v1072 = vsel %vm190, %v1062, 0.0
        %v1073 = vrot.slane %v1072, 4
        %v1074 = vadd.f32 %v1072, %v1073
        %v1075 = vrot.slane %v1074, 2
        %v1076 = vadd.f32 %v1074, %v1075
        %v1077 = vrot.slane %v1076, 1
        %v1078 = vadd.f32 %v1076, %v1077
        %v1079 = vsel %vm190, %v1063, 0.0
        %v1080 = vrot.slane %v1079, 4
        %v1081 = vadd.f32 %v1079, %v1080
        %v1082 = vrot.slane %v1081, 2
        %v1083 = vadd.f32 %v1081, %v1082
        %v1084 = vrot.slane %v1083, 1
        %v1085 = vadd.f32 %v1083, %v1084
        %v1086 = vsel %vm190, %v1064, 0.0
        %v1087 = vrot.slane %v1086, 4
        %v1088 = vadd.f32 %v1086, %v1087
        %v1089 = vrot.slane %v1088, 2
        %v1090 = vadd.f32 %v1088, %v1089
        %v1091 = vrot.slane %v1090, 1
        %v1092 = vadd.f32 %v1090, %v1091
        %v1097 = vsel %vm223, %v1078, %v1071
        %v1098 = vsel %vm225, %v1085, %v1097
        %v1099 = vsel %vm227, %v1092, %v1098
        %v1100 = vsel %vm229, %v1099, 0
        %1102 = vmatprep.subr.mxu0 0.0
        %1103 = vmatpush1.msra.mxu0 %v184
        %1104 = vmatprep.subr.mxu0 0.0
        %1105 = vmatpush1.msra.mxu0 %v185
        %1106 = vmatprep.subr.mxu0 0.0
        %1107 = vmatpush1.msra.mxu0 0.0
        %1108 = vmatprep.subr.mxu0 0.0
        %1109 = vmatpush1.msra.mxu0 0.0
        %1110 = vmatprep.subr.mxu0 0.0
        %1111 = vmatpush1.msra.mxu0 0.0
        %1112 = vmatprep.subr.mxu0 0.0
        %1113 = vmatpush1.msra.mxu0 0.0
        %1114 = vmatprep.subr.mxu0 0.0
        %1115 = vmatpush1.msra.mxu0 0.0
        %1116 = vmatprep.subr.mxu0 0.0
        %1117 = vmatpush1.msra.mxu0 0.0
        %1118 = vmatprep.subr.mxu0 0.0
        %1119 = vmatpush1.msra.mxu0 0.0
        %1120 = vmatprep.subr.mxu0 0.0
        %1121 = vmatpush1.msra.mxu0 0.0
        %1122 = vmatprep.subr.mxu0 0.0
        %1123 = vmatpush1.msra.mxu0 0.0
        %1124 = vmatprep.subr.mxu0 0.0
        %1125 = vmatpush1.msra.mxu0 0.0
        %1126 = vmatprep.subr.mxu0 0.0
        %1127 = vmatpush1.msra.mxu0 0.0
        %1128 = vmatprep.subr.mxu0 0.0
        %1129 = vmatpush1.msra.mxu0 0.0
        %1130 = vmatprep.subr.mxu0 0.0
        %1131 = vmatpush1.msra.mxu0 0.0
        %1132 = vmatprep.subr.mxu0 0.0
        %1133 = vmatpush1.msra.mxu0 0.0
        %1134 = vmatprep.subr.mxu0 0.0
        %1135 = vmatpush1.msra.mxu0 0.0
        %1136 = vmatprep.subr.mxu0 0.0
        %1137 = vmatpush1.msra.mxu0 0.0
        %1138 = vmatprep.subr.mxu0 0.0
        %1139 = vmatpush1.msra.mxu0 0.0
        %1140 = vmatprep.subr.mxu0 0.0
        %1141 = vmatpush1.msra.mxu0 0.0
        %1142 = vmatprep.subr.mxu0 0.0
        %1143 = vmatpush1.msra.mxu0 0.0
        %1144 = vmatprep.subr.mxu0 0.0
        %1145 = vmatpush1.msra.mxu0 0.0
        %1146 = vmatprep.subr.mxu0 0.0
        %1147 = vmatpush1.msra.mxu0 0.0
        %1148 = vmatprep.subr.mxu0 0.0
        %1149 = vmatpush1.msra.mxu0 0.0
        %1150 = vmatprep.subr.mxu0 0.0
        %1151 = vmatpush1.msra.mxu0 0.0
        %1152 = vmatprep.subr.mxu0 0.0
        %1153 = vmatpush1.msra.mxu0 0.0
        %1154 = vmatprep.subr.mxu0 0.0
        %1155 = vmatpush1.msra.mxu0 0.0
        %1156 = vmatprep.subr.mxu0 0.0
        %1157 = vmatpush1.msra.mxu0 0.0
        %1158 = vmatprep.subr.mxu0 0.0
        %1159 = vmatpush1.msra.mxu0 0.0
        %1160 = vmatprep.subr.mxu0 0.0
        %1161 = vmatpush1.msra.mxu0 0.0
        %1162 = vmatprep.subr.mxu0 0.0
        %1163 = vmatpush1.msra.mxu0 0.0
        %1164 = vmatprep.subr.mxu0 0.0
        %1165 = vmatpush1.msra.mxu0 0.0
        %1166 = vmatprep.mubr.f32.mxu0 0.0
        %1167 = vmatmul.mubr.f32.gmra.mrb[0].mxu0 %v1100
        %v1168 = vpop.f32.mrb[0].mxu0
        %v1169 = vadd.f32 0.0, %v1168
        %v1170 = vpop.f32.mrb[0].mxu0
        %1171 = vdwg.mxu0
        %v1172 = vmul.f32 %v1169, 0.5
        %v1175 = vunpack.c.l.s4 1966171168
        %v1176 = vunpack.c.0.s8 %v1175
        %v1177 = vlaneseq
        %v1178 = vshrl.u32 %v1177, 7
        %v1179 = vsub.s32 %v1176, %v1178
        %v1180 = vrot.slane %v1172, %v1179
        %v1181 = vcombine.high %v1180, %v1180
        %v1183 = vunpack.c.l.s4 1966171168
        %v1184 = vunpack.c.0.s8 %v1183
        %v1185 = vlaneseq
        %v1186 = vshrl.u32 %v1185, 7
        %v1187 = vsub.s32 %v1184, %v1186
        %v1188 = vrot.slane %v1180, %v1187
        %v1190 = vunpack.c.l.s4 1966171168
        %v1191 = vunpack.c.0.s8 %v1190
        %v1192 = vlaneseq
        %v1193 = vshrl.u32 %v1192, 7
        %v1194 = vsub.s32 %v1191, %v1193
        %v1195 = vrot.slane %v1181, %v1194
        %v1196 = vcombine.high %v1188, %v1188
        %v1197 = vcombine.high %v1195, %v1195
        %1202 = vst [vmem:[%s182 + $0x6] sm:$0x1] %v1188
        %1203 = vst [vmem:[%s182 + $0x16] sm:$0x1] %v1195
        %1204 = vst [vmem:[%s182 + $0x26] sm:$0x1] %v1196
        %1205 = vst [vmem:[%s182 + $0x36] sm:$0x1] %v1197
        %v1206 = vld [vmem:[%s150 + $0x8] sm:$0x3]
        %v1207 = vld [vmem:[%s150 + $0x18] sm:$0x3]
        %v1208 = vld [vmem:[%s150 + $0x28] sm:$0x3]
        %v1209 = vld [vmem:[%s150 + $0x38] sm:$0x3]
        %v1210 = vsel %vm190, %v1206, 0.0
        %v1211 = vrot.slane %v1210, 4
        %v1212 = vadd.f32 %v1210, %v1211
        %v1213 = vrot.slane %v1212, 2
        %v1214 = vadd.f32 %v1212, %v1213
        %v1215 = vrot.slane %v1214, 1
        %v1216 = vadd.f32 %v1214, %v1215
        %v1217 = vsel %vm190, %v1207, 0.0
        %v1218 = vrot.slane %v1217, 4
        %v1219 = vadd.f32 %v1217, %v1218
        %v1220 = vrot.slane %v1219, 2
        %v1221 = vadd.f32 %v1219, %v1220
        %v1222 = vrot.slane %v1221, 1
        %v1223 = vadd.f32 %v1221, %v1222
        %v1224 = vsel %vm190, %v1208, 0.0
        %v1225 = vrot.slane %v1224, 4
        %v1226 = vadd.f32 %v1224, %v1225
        %v1227 = vrot.slane %v1226, 2
        %v1228 = vadd.f32 %v1226, %v1227
        %v1229 = vrot.slane %v1228, 1
        %v1230 = vadd.f32 %v1228, %v1229
        %v1231 = vsel %vm190, %v1209, 0.0
        %v1232 = vrot.slane %v1231, 4
        %v1233 = vadd.f32 %v1231, %v1232
        %v1234 = vrot.slane %v1233, 2
        %v1235 = vadd.f32 %v1233, %v1234
        %v1236 = vrot.slane %v1235, 1
        %v1237 = vadd.f32 %v1235, %v1236
        %v1242 = vsel %vm223, %v1223, %v1216
        %v1243 = vsel %vm225, %v1230, %v1242
        %v1244 = vsel %vm227, %v1237, %v1243
        %v1245 = vsel %vm229, %v1244, 0
        %1247 = vmatprep.subr.mxu0 0.0
        %1248 = vmatpush1.msra.mxu0 %v184
        %1249 = vmatprep.subr.mxu0 0.0
        %1250 = vmatpush1.msra.mxu0 %v185
        %1251 = vmatprep.subr.mxu0 0.0
        %1252 = vmatpush1.msra.mxu0 0.0
        %1253 = vmatprep.subr.mxu0 0.0
        %1254 = vmatpush1.msra.mxu0 0.0
        %1255 = vmatprep.subr.mxu0 0.0
        %1256 = vmatpush1.msra.mxu0 0.0
        %1257 = vmatprep.subr.mxu0 0.0
        %1258 = vmatpush1.msra.mxu0 0.0
        %1259 = vmatprep.subr.mxu0 0.0
        %1260 = vmatpush1.msra.mxu0 0.0
        %1261 = vmatprep.subr.mxu0 0.0
        %1262 = vmatpush1.msra.mxu0 0.0
        %1263 = vmatprep.subr.mxu0 0.0
        %1264 = vmatpush1.msra.mxu0 0.0
        %1265 = vmatprep.subr.mxu0 0.0
        %1266 = vmatpush1.msra.mxu0 0.0
        %1267 = vmatprep.subr.mxu0 0.0
        %1268 = vmatpush1.msra.mxu0 0.0
        %1269 = vmatprep.subr.mxu0 0.0
        %1270 = vmatpush1.msra.mxu0 0.0
        %1271 = vmatprep.subr.mxu0 0.0
        %1272 = vmatpush1.msra.mxu0 0.0
        %1273 = vmatprep.subr.mxu0 0.0
        %1274 = vmatpush1.msra.mxu0 0.0
        %1275 = vmatprep.subr.mxu0 0.0
        %1276 = vmatpush1.msra.mxu0 0.0
        %1277 = vmatprep.subr.mxu0 0.0
        %1278 = vmatpush1.msra.mxu0 0.0
        %1279 = vmatprep.subr.mxu0 0.0
        %1280 = vmatpush1.msra.mxu0 0.0
        %1281 = vmatprep.subr.mxu0 0.0
        %1282 = vmatpush1.msra.mxu0 0.0
        %1283 = vmatprep.subr.mxu0 0.0
        %1284 = vmatpush1.msra.mxu0 0.0
        %1285 = vmatprep.subr.mxu0 0.0
        %1286 = vmatpush1.msra.mxu0 0.0
        %1287 = vmatprep.subr.mxu0 0.0
        %1288 = vmatpush1.msra.mxu0 0.0
        %1289 = vmatprep.subr.mxu0 0.0
        %1290 = vmatpush1.msra.mxu0 0.0
        %1291 = vmatprep.subr.mxu0 0.0
        %1292 = vmatpush1.msra.mxu0 0.0
        %1293 = vmatprep.subr.mxu0 0.0
        %1294 = vmatpush1.msra.mxu0 0.0
        %1295 = vmatprep.subr.mxu0 0.0
        %1296 = vmatpush1.msra.mxu0 0.0
        %1297 = vmatprep.subr.mxu0 0.0
        %1298 = vmatpush1.msra.mxu0 0.0
        %1299 = vmatprep.subr.mxu0 0.0
        %1300 = vmatpush1.msra.mxu0 0.0
        %1301 = vmatprep.subr.mxu0 0.0
        %1302 = vmatpush1.msra.mxu0 0.0
        %1303 = vmatprep.subr.mxu0 0.0
        %1304 = vmatpush1.msra.mxu0 0.0
        %1305 = vmatprep.subr.mxu0 0.0
        %1306 = vmatpush1.msra.mxu0 0.0
        %1307 = vmatprep.subr.mxu0 0.0
        %1308 = vmatpush1.msra.mxu0 0.0
        %1309 = vmatprep.subr.mxu0 0.0
        %1310 = vmatpush1.msra.mxu0 0.0
        %1311 = vmatprep.mubr.f32.mxu0 0.0
        %1312 = vmatmul.mubr.f32.gmra.mrb[0].mxu0 %v1245
        %v1313 = vpop.f32.mrb[0].mxu0
        %v1314 = vadd.f32 0.0, %v1313
        %v1315 = vpop.f32.mrb[0].mxu0
        %1316 = vdwg.mxu0
        %v1317 = vmul.f32 %v1314, 0.5
        %v1320 = vunpack.c.l.s4 1966171168
        %v1321 = vunpack.c.0.s8 %v1320
        %v1322 = vlaneseq
        %v1323 = vshrl.u32 %v1322, 7
        %v1324 = vsub.s32 %v1321, %v1323
        %v1325 = vrot.slane %v1317, %v1324
        %v1326 = vcombine.high %v1325, %v1325
        %v1328 = vunpack.c.l.s4 1966171168
        %v1329 = vunpack.c.0.s8 %v1328
        %v1330 = vlaneseq
        %v1331 = vshrl.u32 %v1330, 7
        %v1332 = vsub.s32 %v1329, %v1331
        %v1333 = vrot.slane %v1325, %v1332
        %v1335 = vunpack.c.l.s4 1966171168
        %v1336 = vunpack.c.0.s8 %v1335
        %v1337 = vlaneseq
        %v1338 = vshrl.u32 %v1337, 7
        %v1339 = vsub.s32 %v1336, %v1338
        %v1340 = vrot.slane %v1326, %v1339
        %v1341 = vcombine.high %v1333, %v1333
        %v1342 = vcombine.high %v1340, %v1340
        %1347 = vst [vmem:[%s182 + $0x7] sm:$0x1] %v1333
        %1348 = vst [vmem:[%s182 + $0x17] sm:$0x1] %v1340
        %1349 = vst [vmem:[%s182 + $0x27] sm:$0x1] %v1341
        %1350 = vst [vmem:[%s182 + $0x37] sm:$0x1] %v1342
        %v1351 = vld [vmem:[%s150 + $0x9] sm:$0x3]
        %v1352 = vld [vmem:[%s150 + $0x19] sm:$0x3]
        %v1353 = vld [vmem:[%s150 + $0x29] sm:$0x3]
        %v1354 = vld [vmem:[%s150 + $0x39] sm:$0x3]
        %v1355 = vsel %vm190, %v1351, 0.0
        %v1356 = vrot.slane %v1355, 4
        %v1357 = vadd.f32 %v1355, %v1356
        %v1358 = vrot.slane %v1357, 2
        %v1359 = vadd.f32 %v1357, %v1358
        %v1360 = vrot.slane %v1359, 1
        %v1361 = vadd.f32 %v1359, %v1360
        %v1362 = vsel %vm190, %v1352, 0.0
        %v1363 = vrot.slane %v1362, 4
        %v1364 = vadd.f32 %v1362, %v1363
        %v1365 = vrot.slane %v1364, 2
        %v1366 = vadd.f32 %v1364, %v1365
        %v1367 = vrot.slane %v1366, 1
        %v1368 = vadd.f32 %v1366, %v1367
        %v1369 = vsel %vm190, %v1353, 0.0
        %v1370 = vrot.slane %v1369, 4
        %v1371 = vadd.f32 %v1369, %v1370
        %v1372 = vrot.slane %v1371, 2
        %v1373 = vadd.f32 %v1371, %v1372
        %v1374 = vrot.slane %v1373, 1
        %v1375 = vadd.f32 %v1373, %v1374
        %v1376 = vsel %vm190, %v1354, 0.0
        %v1377 = vrot.slane %v1376, 4
        %v1378 = vadd.f32 %v1376, %v1377
        %v1379 = vrot.slane %v1378, 2
        %v1380 = vadd.f32 %v1378, %v1379
        %v1381 = vrot.slane %v1380, 1
        %v1382 = vadd.f32 %v1380, %v1381
        %v1387 = vsel %vm223, %v1368, %v1361
        %v1388 = vsel %vm225, %v1375, %v1387
        %v1389 = vsel %vm227, %v1382, %v1388
        %v1390 = vsel %vm229, %v1389, 0
        %1392 = vmatprep.subr.mxu0 0.0
        %1393 = vmatpush1.msra.mxu0 %v184
        %1394 = vmatprep.subr.mxu0 0.0
        %1395 = vmatpush1.msra.mxu0 %v185
        %1396 = vmatprep.subr.mxu0 0.0
        %1397 = vmatpush1.msra.mxu0 0.0
        %1398 = vmatprep.subr.mxu0 0.0
        %1399 = vmatpush1.msra.mxu0 0.0
        %1400 = vmatprep.subr.mxu0 0.0
        %1401 = vmatpush1.msra.mxu0 0.0
        %1402 = vmatprep.subr.mxu0 0.0
        %1403 = vmatpush1.msra.mxu0 0.0
        %1404 = vmatprep.subr.mxu0 0.0
        %1405 = vmatpush1.msra.mxu0 0.0
        %1406 = vmatprep.subr.mxu0 0.0
        %1407 = vmatpush1.msra.mxu0 0.0
        %1408 = vmatprep.subr.mxu0 0.0
        %1409 = vmatpush1.msra.mxu0 0.0
        %1410 = vmatprep.subr.mxu0 0.0
        %1411 = vmatpush1.msra.mxu0 0.0
        %1412 = vmatprep.subr.mxu0 0.0
        %1413 = vmatpush1.msra.mxu0 0.0
        %1414 = vmatprep.subr.mxu0 0.0
        %1415 = vmatpush1.msra.mxu0 0.0
        %1416 = vmatprep.subr.mxu0 0.0
        %1417 = vmatpush1.msra.mxu0 0.0
        %1418 = vmatprep.subr.mxu0 0.0
        %1419 = vmatpush1.msra.mxu0 0.0
        %1420 = vmatprep.subr.mxu0 0.0
        %1421 = vmatpush1.msra.mxu0 0.0
        %1422 = vmatprep.subr.mxu0 0.0
        %1423 = vmatpush1.msra.mxu0 0.0
        %1424 = vmatprep.subr.mxu0 0.0
        %1425 = vmatpush1.msra.mxu0 0.0
        %1426 = vmatprep.subr.mxu0 0.0
        %1427 = vmatpush1.msra.mxu0 0.0
        %1428 = vmatprep.subr.mxu0 0.0
        %1429 = vmatpush1.msra.mxu0 0.0
        %1430 = vmatprep.subr.mxu0 0.0
        %1431 = vmatpush1.msra.mxu0 0.0
        %1432 = vmatprep.subr.mxu0 0.0
        %1433 = vmatpush1.msra.mxu0 0.0
        %1434 = vmatprep.subr.mxu0 0.0
        %1435 = vmatpush1.msra.mxu0 0.0
        %1436 = vmatprep.subr.mxu0 0.0
        %1437 = vmatpush1.msra.mxu0 0.0
        %1438 = vmatprep.subr.mxu0 0.0
        %1439 = vmatpush1.msra.mxu0 0.0
        %1440 = vmatprep.subr.mxu0 0.0
        %1441 = vmatpush1.msra.mxu0 0.0
        %1442 = vmatprep.subr.mxu0 0.0
        %1443 = vmatpush1.msra.mxu0 0.0
        %1444 = vmatprep.subr.mxu0 0.0
        %1445 = vmatpush1.msra.mxu0 0.0
        %1446 = vmatprep.subr.mxu0 0.0
        %1447 = vmatpush1.msra.mxu0 0.0
        %1448 = vmatprep.subr.mxu0 0.0
        %1449 = vmatpush1.msra.mxu0 0.0
        %1450 = vmatprep.subr.mxu0 0.0
        %1451 = vmatpush1.msra.mxu0 0.0
        %1452 = vmatprep.subr.mxu0 0.0
        %1453 = vmatpush1.msra.mxu0 0.0
        %1454 = vmatprep.subr.mxu0 0.0
        %1455 = vmatpush1.msra.mxu0 0.0
        %1456 = vmatprep.mubr.f32.mxu0 0.0
        %1457 = vmatmul.mubr.f32.gmra.mrb[0].mxu0 %v1390
        %v1458 = vpop.f32.mrb[0].mxu0
        %v1459 = vadd.f32 0.0, %v1458
        %v1460 = vpop.f32.mrb[0].mxu0
        %1461 = vdwg.mxu0
        %v1462 = vmul.f32 %v1459, 0.5
        %v1465 = vunpack.c.l.s4 1966171168
        %v1466 = vunpack.c.0.s8 %v1465
        %v1467 = vlaneseq
        %v1468 = vshrl.u32 %v1467, 7
        %v1469 = vsub.s32 %v1466, %v1468
        %v1470 = vrot.slane %v1462, %v1469
        %v1471 = vcombine.high %v1470, %v1470
        %v1473 = vunpack.c.l.s4 1966171168
        %v1474 = vunpack.c.0.s8 %v1473
        %v1475 = vlaneseq
        %v1476 = vshrl.u32 %v1475, 7
        %v1477 = vsub.s32 %v1474, %v1476
        %v1478 = vrot.slane %v1470, %v1477
        %v1480 = vunpack.c.l.s4 1966171168
        %v1481 = vunpack.c.0.s8 %v1480
        %v1482 = vlaneseq
        %v1483 = vshrl.u32 %v1482, 7
        %v1484 = vsub.s32 %v1481, %v1483
        %v1485 = vrot.slane %v1471, %v1484
        %v1486 = vcombine.high %v1478, %v1478
        %v1487 = vcombine.high %v1485, %v1485
        %1492 = vst [vmem:[%s182 + $0x8] sm:$0x1] %v1478
        %1493 = vst [vmem:[%s182 + $0x18] sm:$0x1] %v1485
        %1494 = vst [vmem:[%s182 + $0x28] sm:$0x1] %v1486
        %1495 = vst [vmem:[%s182 + $0x38] sm:$0x1] %v1487
        %v1496 = vld [vmem:[%s150 + $0xa] sm:$0x3]
        %v1497 = vld [vmem:[%s150 + $0x1a] sm:$0x3]
        %v1498 = vld [vmem:[%s150 + $0x2a] sm:$0x3]
        %v1499 = vld [vmem:[%s150 + $0x3a] sm:$0x3]
        %v1500 = vsel %vm190, %v1496, 0.0
        %v1501 = vrot.slane %v1500, 4
        %v1502 = vadd.f32 %v1500, %v1501
        %v1503 = vrot.slane %v1502, 2
        %v1504 = vadd.f32 %v1502, %v1503
        %v1505 = vrot.slane %v1504, 1
        %v1506 = vadd.f32 %v1504, %v1505
        %v1507 = vsel %vm190, %v1497, 0.0
        %v1508 = vrot.slane %v1507, 4
        %v1509 = vadd.f32 %v1507, %v1508
        %v1510 = vrot.slane %v1509, 2
        %v1511 = vadd.f32 %v1509, %v1510
        %v1512 = vrot.slane %v1511, 1
        %v1513 = vadd.f32 %v1511, %v1512
        %v1514 = vsel %vm190, %v1498, 0.0
        %v1515 = vrot.slane %v1514, 4
        %v1516 = vadd.f32 %v1514, %v1515
        %v1517 = vrot.slane %v1516, 2
        %v1518 = vadd.f32 %v1516, %v1517
        %v1519 = vrot.slane %v1518, 1
        %v1520 = vadd.f32 %v1518, %v1519
        %v1521 = vsel %vm190, %v1499, 0.0
        %v1522 = vrot.slane %v1521, 4
        %v1523 = vadd.f32 %v1521, %v1522
        %v1524 = vrot.slane %v1523, 2
        %v1525 = vadd.f32 %v1523, %v1524
        %v1526 = vrot.slane %v1525, 1
        %v1527 = vadd.f32 %v1525, %v1526
        %v1532 = vsel %vm223, %v1513, %v1506
        %v1533 = vsel %vm225, %v1520, %v1532
        %v1534 = vsel %vm227, %v1527, %v1533
        %v1535 = vsel %vm229, %v1534, 0
        %1537 = vmatprep.subr.mxu0 0.0
        %1538 = vmatpush1.msra.mxu0 %v184
        %1539 = vmatprep.subr.mxu0 0.0
        %1540 = vmatpush1.msra.mxu0 %v185
        %1541 = vmatprep.subr.mxu0 0.0
        %1542 = vmatpush1.msra.mxu0 0.0
        %1543 = vmatprep.subr.mxu0 0.0
        %1544 = vmatpush1.msra.mxu0 0.0
        %1545 = vmatprep.subr.mxu0 0.0
        %1546 = vmatpush1.msra.mxu0 0.0
        %1547 = vmatprep.subr.mxu0 0.0
        %1548 = vmatpush1.msra.mxu0 0.0
        %1549 = vmatprep.subr.mxu0 0.0
        %1550 = vmatpush1.msra.mxu0 0.0
        %1551 = vmatprep.subr.mxu0 0.0
        %1552 = vmatpush1.msra.mxu0 0.0
        %1553 = vmatprep.subr.mxu0 0.0
        %1554 = vmatpush1.msra.mxu0 0.0
        %1555 = vmatprep.subr.mxu0 0.0
        %1556 = vmatpush1.msra.mxu0 0.0
        %1557 = vmatprep.subr.mxu0 0.0
        %1558 = vmatpush1.msra.mxu0 0.0
        %1559 = vmatprep.subr.mxu0 0.0
        %1560 = vmatpush1.msra.mxu0 0.0
        %1561 = vmatprep.subr.mxu0 0.0
        %1562 = vmatpush1.msra.mxu0 0.0
        %1563 = vmatprep.subr.mxu0 0.0
        %1564 = vmatpush1.msra.mxu0 0.0
        %1565 = vmatprep.subr.mxu0 0.0
        %1566 = vmatpush1.msra.mxu0 0.0
        %1567 = vmatprep.subr.mxu0 0.0
        %1568 = vmatpush1.msra.mxu0 0.0
        %1569 = vmatprep.subr.mxu0 0.0
        %1570 = vmatpush1.msra.mxu0 0.0
        %1571 = vmatprep.subr.mxu0 0.0
        %1572 = vmatpush1.msra.mxu0 0.0
        %1573 = vmatprep.subr.mxu0 0.0
        %1574 = vmatpush1.msra.mxu0 0.0
        %1575 = vmatprep.subr.mxu0 0.0
        %1576 = vmatpush1.msra.mxu0 0.0
        %1577 = vmatprep.subr.mxu0 0.0
        %1578 = vmatpush1.msra.mxu0 0.0
        %1579 = vmatprep.subr.mxu0 0.0
        %1580 = vmatpush1.msra.mxu0 0.0
        %1581 = vmatprep.subr.mxu0 0.0
        %1582 = vmatpush1.msra.mxu0 0.0
        %1583 = vmatprep.subr.mxu0 0.0
        %1584 = vmatpush1.msra.mxu0 0.0
        %1585 = vmatprep.subr.mxu0 0.0
        %1586 = vmatpush1.msra.mxu0 0.0
        %1587 = vmatprep.subr.mxu0 0.0
        %1588 = vmatpush1.msra.mxu0 0.0
        %1589 = vmatprep.subr.mxu0 0.0
        %1590 = vmatpush1.msra.mxu0 0.0
        %1591 = vmatprep.subr.mxu0 0.0
        %1592 = vmatpush1.msra.mxu0 0.0
        %1593 = vmatprep.subr.mxu0 0.0
        %1594 = vmatpush1.msra.mxu0 0.0
        %1595 = vmatprep.subr.mxu0 0.0
        %1596 = vmatpush1.msra.mxu0 0.0
        %1597 = vmatprep.subr.mxu0 0.0
        %1598 = vmatpush1.msra.mxu0 0.0
        %1599 = vmatprep.subr.mxu0 0.0
        %1600 = vmatpush1.msra.mxu0 0.0
        %1601 = vmatprep.mubr.f32.mxu0 0.0
        %1602 = vmatmul.mubr.f32.gmra.mrb[0].mxu0 %v1535
        %v1603 = vpop.f32.mrb[0].mxu0
        %v1604 = vadd.f32 0.0, %v1603
        %v1605 = vpop.f32.mrb[0].mxu0
        %1606 = vdwg.mxu0
        %v1607 = vmul.f32 %v1604, 0.5
        %v1610 = vunpack.c.l.s4 1966171168
        %v1611 = vunpack.c.0.s8 %v1610
        %v1612 = vlaneseq
        %v1613 = vshrl.u32 %v1612, 7
        %v1614 = vsub.s32 %v1611, %v1613
        %v1615 = vrot.slane %v1607, %v1614
        %v1616 = vcombine.high %v1615, %v1615
        %v1618 = vunpack.c.l.s4 1966171168
        %v1619 = vunpack.c.0.s8 %v1618
        %v1620 = vlaneseq
        %v1621 = vshrl.u32 %v1620, 7
        %v1622 = vsub.s32 %v1619, %v1621
        %v1623 = vrot.slane %v1615, %v1622
        %v1625 = vunpack.c.l.s4 1966171168
        %v1626 = vunpack.c.0.s8 %v1625
        %v1627 = vlaneseq
        %v1628 = vshrl.u32 %v1627, 7
        %v1629 = vsub.s32 %v1626, %v1628
        %v1630 = vrot.slane %v1616, %v1629
        %v1631 = vcombine.high %v1623, %v1623
        %v1632 = vcombine.high %v1630, %v1630
        %1637 = vst [vmem:[%s182 + $0x9] sm:$0x1] %v1623
        %1638 = vst [vmem:[%s182 + $0x19] sm:$0x1] %v1630
        %1639 = vst [vmem:[%s182 + $0x29] sm:$0x1] %v1631
        %1640 = vst [vmem:[%s182 + $0x39] sm:$0x1] %v1632
        %v1641 = vld [vmem:[%s150 + $0xb] sm:$0x3]
        %v1642 = vld [vmem:[%s150 + $0x1b] sm:$0x3]
        %v1643 = vld [vmem:[%s150 + $0x2b] sm:$0x3]
        %v1644 = vld [vmem:[%s150 + $0x3b] sm:$0x3]
        %v1645 = vsel %vm190, %v1641, 0.0
        %v1646 = vrot.slane %v1645, 4
        %v1647 = vadd.f32 %v1645, %v1646
        %v1648 = vrot.slane %v1647, 2
        %v1649 = vadd.f32 %v1647, %v1648
        %v1650 = vrot.slane %v1649, 1
        %v1651 = vadd.f32 %v1649, %v1650
        %v1652 = vsel %vm190, %v1642, 0.0
        %v1653 = vrot.slane %v1652, 4
        %v1654 = vadd.f32 %v1652, %v1653
        %v1655 = vrot.slane %v1654, 2
        %v1656 = vadd.f32 %v1654, %v1655
        %v1657 = vrot.slane %v1656, 1
        %v1658 = vadd.f32 %v1656, %v1657
        %v1659 = vsel %vm190, %v1643, 0.0
        %v1660 = vrot.slane %v1659, 4
        %v1661 = vadd.f32 %v1659, %v1660
        %v1662 = vrot.slane %v1661, 2
        %v1663 = vadd.f32 %v1661, %v1662
        %v1664 = vrot.slane %v1663, 1
        %v1665 = vadd.f32 %v1663, %v1664
        %v1666 = vsel %vm190, %v1644, 0.0
        %v1667 = vrot.slane %v1666, 4
        %v1668 = vadd.f32 %v1666, %v1667
        %v1669 = vrot.slane %v1668, 2
        %v1670 = vadd.f32 %v1668, %v1669
        %v1671 = vrot.slane %v1670, 1
        %v1672 = vadd.f32 %v1670, %v1671
        %v1677 = vsel %vm223, %v1658, %v1651
        %v1678 = vsel %vm225, %v1665, %v1677
        %v1679 = vsel %vm227, %v1672, %v1678
        %v1680 = vsel %vm229, %v1679, 0
        %1682 = vmatprep.subr.mxu0 0.0
        %1683 = vmatpush1.msra.mxu0 %v184
        %1684 = vmatprep.subr.mxu0 0.0
        %1685 = vmatpush1.msra.mxu0 %v185
        %1686 = vmatprep.subr.mxu0 0.0
        %1687 = vmatpush1.msra.mxu0 0.0
        %1688 = vmatprep.subr.mxu0 0.0
        %1689 = vmatpush1.msra.mxu0 0.0
        %1690 = vmatprep.subr.mxu0 0.0
        %1691 = vmatpush1.msra.mxu0 0.0
        %1692 = vmatprep.subr.mxu0 0.0
        %1693 = vmatpush1.msra.mxu0 0.0
        %1694 = vmatprep.subr.mxu0 0.0
        %1695 = vmatpush1.msra.mxu0 0.0
        %1696 = vmatprep.subr.mxu0 0.0
        %1697 = vmatpush1.msra.mxu0 0.0
        %1698 = vmatprep.subr.mxu0 0.0
        %1699 = vmatpush1.msra.mxu0 0.0
        %1700 = vmatprep.subr.mxu0 0.0
        %1701 = vmatpush1.msra.mxu0 0.0
        %1702 = vmatprep.subr.mxu0 0.0
        %1703 = vmatpush1.msra.mxu0 0.0
        %1704 = vmatprep.subr.mxu0 0.0
        %1705 = vmatpush1.msra.mxu0 0.0
        %1706 = vmatprep.subr.mxu0 0.0
        %1707 = vmatpush1.msra.mxu0 0.0
        %1708 = vmatprep.subr.mxu0 0.0
        %1709 = vmatpush1.msra.mxu0 0.0
        %1710 = vmatprep.subr.mxu0 0.0
        %1711 = vmatpush1.msra.mxu0 0.0
        %1712 = vmatprep.subr.mxu0 0.0
        %1713 = vmatpush1.msra.mxu0 0.0
        %1714 = vmatprep.subr.mxu0 0.0
        %1715 = vmatpush1.msra.mxu0 0.0
        %1716 = vmatprep.subr.mxu0 0.0
        %1717 = vmatpush1.msra.mxu0 0.0
        %1718 = vmatprep.subr.mxu0 0.0
        %1719 = vmatpush1.msra.mxu0 0.0
        %1720 = vmatprep.subr.mxu0 0.0
        %1721 = vmatpush1.msra.mxu0 0.0
        %1722 = vmatprep.subr.mxu0 0.0
        %1723 = vmatpush1.msra.mxu0 0.0
        %1724 = vmatprep.subr.mxu0 0.0
        %1725 = vmatpush1.msra.mxu0 0.0
        %1726 = vmatprep.subr.mxu0 0.0
        %1727 = vmatpush1.msra.mxu0 0.0
        %1728 = vmatprep.subr.mxu0 0.0
        %1729 = vmatpush1.msra.mxu0 0.0
        %1730 = vmatprep.subr.mxu0 0.0
        %1731 = vmatpush1.msra.mxu0 0.0
        %1732 = vmatprep.subr.mxu0 0.0
        %1733 = vmatpush1.msra.mxu0 0.0
        %1734 = vmatprep.subr.mxu0 0.0
        %1735 = vmatpush1.msra.mxu0 0.0
        %1736 = vmatprep.subr.mxu0 0.0
        %1737 = vmatpush1.msra.mxu0 0.0
        %1738 = vmatprep.subr.mxu0 0.0
        %1739 = vmatpush1.msra.mxu0 0.0
        %1740 = vmatprep.subr.mxu0 0.0
        %1741 = vmatpush1.msra.mxu0 0.0
        %1742 = vmatprep.subr.mxu0 0.0
        %1743 = vmatpush1.msra.mxu0 0.0
        %1744 = vmatprep.subr.mxu0 0.0
        %1745 = vmatpush1.msra.mxu0 0.0
        %1746 = vmatprep.mubr.f32.mxu0 0.0
        %1747 = vmatmul.mubr.f32.gmra.mrb[0].mxu0 %v1680
        %v1748 = vpop.f32.mrb[0].mxu0
        %v1749 = vadd.f32 0.0, %v1748
        %v1750 = vpop.f32.mrb[0].mxu0
        %1751 = vdwg.mxu0
        %v1752 = vmul.f32 %v1749, 0.5
        %v1755 = vunpack.c.l.s4 1966171168
        %v1756 = vunpack.c.0.s8 %v1755
        %v1757 = vlaneseq
        %v1758 = vshrl.u32 %v1757, 7
        %v1759 = vsub.s32 %v1756, %v1758
        %v1760 = vrot.slane %v1752, %v1759
        %v1761 = vcombine.high %v1760, %v1760
        %v1763 = vunpack.c.l.s4 1966171168
        %v1764 = vunpack.c.0.s8 %v1763
        %v1765 = vlaneseq
        %v1766 = vshrl.u32 %v1765, 7
        %v1767 = vsub.s32 %v1764, %v1766
        %v1768 = vrot.slane %v1760, %v1767
        %v1770 = vunpack.c.l.s4 1966171168
        %v1771 = vunpack.c.0.s8 %v1770
        %v1772 = vlaneseq
        %v1773 = vshrl.u32 %v1772, 7
        %v1774 = vsub.s32 %v1771, %v1773
        %v1775 = vrot.slane %v1761, %v1774
        %v1776 = vcombine.high %v1768, %v1768
        %v1777 = vcombine.high %v1775, %v1775
        %1782 = vst [vmem:[%s182 + $0xa] sm:$0x1] %v1768
        %1783 = vst [vmem:[%s182 + $0x1a] sm:$0x1] %v1775
        %1784 = vst [vmem:[%s182 + $0x2a] sm:$0x1] %v1776
        %1785 = vst [vmem:[%s182 + $0x3a] sm:$0x1] %v1777
        %v1786 = vld [vmem:[%s150 + $0xc] sm:$0x3]
        %v1787 = vld [vmem:[%s150 + $0x1c] sm:$0x3]
        %v1788 = vld [vmem:[%s150 + $0x2c] sm:$0x3]
        %v1789 = vld [vmem:[%s150 + $0x3c] sm:$0x3]
        %v1790 = vsel %vm190, %v1786, 0.0
        %v1791 = vrot.slane %v1790, 4
        %v1792 = vadd.f32 %v1790, %v1791
        %v1793 = vrot.slane %v1792, 2
        %v1794 = vadd.f32 %v1792, %v1793
        %v1795 = vrot.slane %v1794, 1
        %v1796 = vadd.f32 %v1794, %v1795
        %v1797 = vsel %vm190, %v1787, 0.0
        %v1798 = vrot.slane %v1797, 4
        %v1799 = vadd.f32 %v1797, %v1798
        %v1800 = vrot.slane %v1799, 2
        %v1801 = vadd.f32 %v1799, %v1800
        %v1802 = vrot.slane %v1801, 1
        %v1803 = vadd.f32 %v1801, %v1802
        %v1804 = vsel %vm190, %v1788, 0.0
        %v1805 = vrot.slane %v1804, 4
        %v1806 = vadd.f32 %v1804, %v1805
        %v1807 = vrot.slane %v1806, 2
        %v1808 = vadd.f32 %v1806, %v1807
        %v1809 = vrot.slane %v1808, 1
        %v1810 = vadd.f32 %v1808, %v1809
        %v1811 = vsel %vm190, %v1789, 0.0
        %v1812 = vrot.slane %v1811, 4
        %v1813 = vadd.f32 %v1811, %v1812
        %v1814 = vrot.slane %v1813, 2
        %v1815 = vadd.f32 %v1813, %v1814
        %v1816 = vrot.slane %v1815, 1
        %v1817 = vadd.f32 %v1815, %v1816
        %v1822 = vsel %vm223, %v1803, %v1796
        %v1823 = vsel %vm225, %v1810, %v1822
        %v1824 = vsel %vm227, %v1817, %v1823
        %v1825 = vsel %vm229, %v1824, 0
        %1827 = vmatprep.subr.mxu0 0.0
        %1828 = vmatpush1.msra.mxu0 %v184
        %1829 = vmatprep.subr.mxu0 0.0
        %1830 = vmatpush1.msra.mxu0 %v185
        %1831 = vmatprep.subr.mxu0 0.0
        %1832 = vmatpush1.msra.mxu0 0.0
        %1833 = vmatprep.subr.mxu0 0.0
        %1834 = vmatpush1.msra.mxu0 0.0
        %1835 = vmatprep.subr.mxu0 0.0
        %1836 = vmatpush1.msra.mxu0 0.0
        %1837 = vmatprep.subr.mxu0 0.0
        %1838 = vmatpush1.msra.mxu0 0.0
        %1839 = vmatprep.subr.mxu0 0.0
        %1840 = vmatpush1.msra.mxu0 0.0
        %1841 = vmatprep.subr.mxu0 0.0
        %1842 = vmatpush1.msra.mxu0 0.0
        %1843 = vmatprep.subr.mxu0 0.0
        %1844 = vmatpush1.msra.mxu0 0.0
        %1845 = vmatprep.subr.mxu0 0.0
        %1846 = vmatpush1.msra.mxu0 0.0
        %1847 = vmatprep.subr.mxu0 0.0
        %1848 = vmatpush1.msra.mxu0 0.0
        %1849 = vmatprep.subr.mxu0 0.0
        %1850 = vmatpush1.msra.mxu0 0.0
        %1851 = vmatprep.subr.mxu0 0.0
        %1852 = vmatpush1.msra.mxu0 0.0
        %1853 = vmatprep.subr.mxu0 0.0
        %1854 = vmatpush1.msra.mxu0 0.0
        %1855 = vmatprep.subr.mxu0 0.0
        %1856 = vmatpush1.msra.mxu0 0.0
        %1857 = vmatprep.subr.mxu0 0.0
        %1858 = vmatpush1.msra.mxu0 0.0
        %1859 = vmatprep.subr.mxu0 0.0
        %1860 = vmatpush1.msra.mxu0 0.0
        %1861 = vmatprep.subr.mxu0 0.0
        %1862 = vmatpush1.msra.mxu0 0.0
        %1863 = vmatprep.subr.mxu0 0.0
        %1864 = vmatpush1.msra.mxu0 0.0
        %1865 = vmatprep.subr.mxu0 0.0
        %1866 = vmatpush1.msra.mxu0 0.0
        %1867 = vmatprep.subr.mxu0 0.0
        %1868 = vmatpush1.msra.mxu0 0.0
        %1869 = vmatprep.subr.mxu0 0.0
        %1870 = vmatpush1.msra.mxu0 0.0
        %1871 = vmatprep.subr.mxu0 0.0
        %1872 = vmatpush1.msra.mxu0 0.0
        %1873 = vmatprep.subr.mxu0 0.0
        %1874 = vmatpush1.msra.mxu0 0.0
        %1875 = vmatprep.subr.mxu0 0.0
        %1876 = vmatpush1.msra.mxu0 0.0
        %1877 = vmatprep.subr.mxu0 0.0
        %1878 = vmatpush1.msra.mxu0 0.0
        %1879 = vmatprep.subr.mxu0 0.0
        %1880 = vmatpush1.msra.mxu0 0.0
        %1881 = vmatprep.subr.mxu0 0.0
        %1882 = vmatpush1.msra.mxu0 0.0
        %1883 = vmatprep.subr.mxu0 0.0
        %1884 = vmatpush1.msra.mxu0 0.0
        %1885 = vmatprep.subr.mxu0 0.0
        %1886 = vmatpush1.msra.mxu0 0.0
        %1887 = vmatprep.subr.mxu0 0.0
        %1888 = vmatpush1.msra.mxu0 0.0
        %1889 = vmatprep.subr.mxu0 0.0
        %1890 = vmatpush1.msra.mxu0 0.0
        %1891 = vmatprep.mubr.f32.mxu0 0.0
        %1892 = vmatmul.mubr.f32.gmra.mrb[0].mxu0 %v1825
        %v1893 = vpop.f32.mrb[0].mxu0
        %v1894 = vadd.f32 0.0, %v1893
        %v1895 = vpop.f32.mrb[0].mxu0
        %1896 = vdwg.mxu0
        %v1897 = vmul.f32 %v1894, 0.5
        %v1900 = vunpack.c.l.s4 1966171168
        %v1901 = vunpack.c.0.s8 %v1900
        %v1902 = vlaneseq
        %v1903 = vshrl.u32 %v1902, 7
        %v1904 = vsub.s32 %v1901, %v1903
        %v1905 = vrot.slane %v1897, %v1904
        %v1906 = vcombine.high %v1905, %v1905
        %v1908 = vunpack.c.l.s4 1966171168
        %v1909 = vunpack.c.0.s8 %v1908
        %v1910 = vlaneseq
        %v1911 = vshrl.u32 %v1910, 7
        %v1912 = vsub.s32 %v1909, %v1911
        %v1913 = vrot.slane %v1905, %v1912
        %v1915 = vunpack.c.l.s4 1966171168
        %v1916 = vunpack.c.0.s8 %v1915
        %v1917 = vlaneseq
        %v1918 = vshrl.u32 %v1917, 7
        %v1919 = vsub.s32 %v1916, %v1918
        %v1920 = vrot.slane %v1906, %v1919
        %v1921 = vcombine.high %v1913, %v1913
        %v1922 = vcombine.high %v1920, %v1920
        %1927 = vst [vmem:[%s182 + $0xb] sm:$0x1] %v1913
        %1928 = vst [vmem:[%s182 + $0x1b] sm:$0x1] %v1920
        %1929 = vst [vmem:[%s182 + $0x2b] sm:$0x1] %v1921
        %1930 = vst [vmem:[%s182 + $0x3b] sm:$0x1] %v1922
        %v1931 = vld [vmem:[%s150 + $0xd] sm:$0x3]
        %v1932 = vld [vmem:[%s150 + $0x1d] sm:$0x3]
        %v1933 = vld [vmem:[%s150 + $0x2d] sm:$0x3]
        %v1934 = vld [vmem:[%s150 + $0x3d] sm:$0x3]
        %v1935 = vsel %vm190, %v1931, 0.0
        %v1936 = vrot.slane %v1935, 4
        %v1937 = vadd.f32 %v1935, %v1936
        %v1938 = vrot.slane %v1937, 2
        %v1939 = vadd.f32 %v1937, %v1938
        %v1940 = vrot.slane %v1939, 1
        %v1941 = vadd.f32 %v1939, %v1940
        %v1942 = vsel %vm190, %v1932, 0.0
        %v1943 = vrot.slane %v1942, 4
        %v1944 = vadd.f32 %v1942, %v1943
        %v1945 = vrot.slane %v1944, 2
        %v1946 = vadd.f32 %v1944, %v1945
        %v1947 = vrot.slane %v1946, 1
        %v1948 = vadd.f32 %v1946, %v1947
        %v1949 = vsel %vm190, %v1933, 0.0
        %v1950 = vrot.slane %v1949, 4
        %v1951 = vadd.f32 %v1949, %v1950
        %v1952 = vrot.slane %v1951, 2
        %v1953 = vadd.f32 %v1951, %v1952
        %v1954 = vrot.slane %v1953, 1
        %v1955 = vadd.f32 %v1953, %v1954
        %v1956 = vsel %vm190, %v1934, 0.0
        %v1957 = vrot.slane %v1956, 4
        %v1958 = vadd.f32 %v1956, %v1957
        %v1959 = vrot.slane %v1958, 2
        %v1960 = vadd.f32 %v1958, %v1959
        %v1961 = vrot.slane %v1960, 1
        %v1962 = vadd.f32 %v1960, %v1961
        %v1967 = vsel %vm223, %v1948, %v1941
        %v1968 = vsel %vm225, %v1955, %v1967
        %v1969 = vsel %vm227, %v1962, %v1968
        %v1970 = vsel %vm229, %v1969, 0
        %1972 = vmatprep.subr.mxu0 0.0
        %1973 = vmatpush1.msra.mxu0 %v184
        %1974 = vmatprep.subr.mxu0 0.0
        %1975 = vmatpush1.msra.mxu0 %v185
        %1976 = vmatprep.subr.mxu0 0.0
        %1977 = vmatpush1.msra.mxu0 0.0
        %1978 = vmatprep.subr.mxu0 0.0
        %1979 = vmatpush1.msra.mxu0 0.0
        %1980 = vmatprep.subr.mxu0 0.0
        %1981 = vmatpush1.msra.mxu0 0.0
        %1982 = vmatprep.subr.mxu0 0.0
        %1983 = vmatpush1.msra.mxu0 0.0
        %1984 = vmatprep.subr.mxu0 0.0
        %1985 = vmatpush1.msra.mxu0 0.0
        %1986 = vmatprep.subr.mxu0 0.0
        %1987 = vmatpush1.msra.mxu0 0.0
        %1988 = vmatprep.subr.mxu0 0.0
        %1989 = vmatpush1.msra.mxu0 0.0
        %1990 = vmatprep.subr.mxu0 0.0
        %1991 = vmatpush1.msra.mxu0 0.0
        %1992 = vmatprep.subr.mxu0 0.0
        %1993 = vmatpush1.msra.mxu0 0.0
        %1994 = vmatprep.subr.mxu0 0.0
        %1995 = vmatpush1.msra.mxu0 0.0
        %1996 = vmatprep.subr.mxu0 0.0
        %1997 = vmatpush1.msra.mxu0 0.0
        %1998 = vmatprep.subr.mxu0 0.0
        %1999 = vmatpush1.msra.mxu0 0.0
        %2000 = vmatprep.subr.mxu0 0.0
        %2001 = vmatpush1.msra.mxu0 0.0
        %2002 = vmatprep.subr.mxu0 0.0
        %2003 = vmatpush1.msra.mxu0 0.0
        %2004 = vmatprep.subr.mxu0 0.0
        %2005 = vmatpush1.msra.mxu0 0.0
        %2006 = vmatprep.subr.mxu0 0.0
        %2007 = vmatpush1.msra.mxu0 0.0
        %2008 = vmatprep.subr.mxu0 0.0
        %2009 = vmatpush1.msra.mxu0 0.0
        %2010 = vmatprep.subr.mxu0 0.0
        %2011 = vmatpush1.msra.mxu0 0.0
        %2012 = vmatprep.subr.mxu0 0.0
        %2013 = vmatpush1.msra.mxu0 0.0
        %2014 = vmatprep.subr.mxu0 0.0
        %2015 = vmatpush1.msra.mxu0 0.0
        %2016 = vmatprep.subr.mxu0 0.0
        %2017 = vmatpush1.msra.mxu0 0.0
        %2018 = vmatprep.subr.mxu0 0.0
        %2019 = vmatpush1.msra.mxu0 0.0
        %2020 = vmatprep.subr.mxu0 0.0
        %2021 = vmatpush1.msra.mxu0 0.0
        %2022 = vmatprep.subr.mxu0 0.0
        %2023 = vmatpush1.msra.mxu0 0.0
        %2024 = vmatprep.subr.mxu0 0.0
        %2025 = vmatpush1.msra.mxu0 0.0
        %2026 = vmatprep.subr.mxu0 0.0
        %2027 = vmatpush1.msra.mxu0 0.0
        %2028 = vmatprep.subr.mxu0 0.0
        %2029 = vmatpush1.msra.mxu0 0.0
        %2030 = vmatprep.subr.mxu0 0.0
        %2031 = vmatpush1.msra.mxu0 0.0
        %2032 = vmatprep.subr.mxu0 0.0
        %2033 = vmatpush1.msra.mxu0 0.0
        %2034 = vmatprep.subr.mxu0 0.0
        %2035 = vmatpush1.msra.mxu0 0.0
        %2036 = vmatprep.mubr.f32.mxu0 0.0
        %2037 = vmatmul.mubr.f32.gmra.mrb[0].mxu0 %v1970
        %v2038 = vpop.f32.mrb[0].mxu0
        %v2039 = vadd.f32 0.0, %v2038
        %v2040 = vpop.f32.mrb[0].mxu0
        %2041 = vdwg.mxu0
        %v2042 = vmul.f32 %v2039, 0.5
        %v2045 = vunpack.c.l.s4 1966171168
        %v2046 = vunpack.c.0.s8 %v2045
        %v2047 = vlaneseq
        %v2048 = vshrl.u32 %v2047, 7
        %v2049 = vsub.s32 %v2046, %v2048
        %v2050 = vrot.slane %v2042, %v2049
        %v2051 = vcombine.high %v2050, %v2050
        %v2053 = vunpack.c.l.s4 1966171168
        %v2054 = vunpack.c.0.s8 %v2053
        %v2055 = vlaneseq
        %v2056 = vshrl.u32 %v2055, 7
        %v2057 = vsub.s32 %v2054, %v2056
        %v2058 = vrot.slane %v2050, %v2057
        %v2060 = vunpack.c.l.s4 1966171168
        %v2061 = vunpack.c.0.s8 %v2060
        %v2062 = vlaneseq
        %v2063 = vshrl.u32 %v2062, 7
        %v2064 = vsub.s32 %v2061, %v2063
        %v2065 = vrot.slane %v2051, %v2064
        %v2066 = vcombine.high %v2058, %v2058
        %v2067 = vcombine.high %v2065, %v2065
        %2072 = vst [vmem:[%s182 + $0xc] sm:$0x1] %v2058
        %2073 = vst [vmem:[%s182 + $0x1c] sm:$0x1] %v2065
        %2074 = vst [vmem:[%s182 + $0x2c] sm:$0x1] %v2066
        %2075 = vst [vmem:[%s182 + $0x3c] sm:$0x1] %v2067
        %v2076 = vld [vmem:[%s150 + $0xe] sm:$0x3]
        %v2077 = vld [vmem:[%s150 + $0x1e] sm:$0x3]
        %v2078 = vld [vmem:[%s150 + $0x2e] sm:$0x3]
        %v2079 = vld [vmem:[%s150 + $0x3e] sm:$0x3]
        %v2080 = vsel %vm190, %v2076, 0.0
        %v2081 = vrot.slane %v2080, 4
        %v2082 = vadd.f32 %v2080, %v2081
        %v2083 = vrot.slane %v2082, 2
        %v2084 = vadd.f32 %v2082, %v2083
        %v2085 = vrot.slane %v2084, 1
        %v2086 = vadd.f32 %v2084, %v2085
        %v2087 = vsel %vm190, %v2077, 0.0
        %v2088 = vrot.slane %v2087, 4
        %v2089 = vadd.f32 %v2087, %v2088
        %v2090 = vrot.slane %v2089, 2
        %v2091 = vadd.f32 %v2089, %v2090
        %v2092 = vrot.slane %v2091, 1
        %v2093 = vadd.f32 %v2091, %v2092
        %v2094 = vsel %vm190, %v2078, 0.0
        %v2095 = vrot.slane %v2094, 4
        %v2096 = vadd.f32 %v2094, %v2095
        %v2097 = vrot.slane %v2096, 2
        %v2098 = vadd.f32 %v2096, %v2097
        %v2099 = vrot.slane %v2098, 1
        %v2100 = vadd.f32 %v2098, %v2099
        %v2101 = vsel %vm190, %v2079, 0.0
        %v2102 = vrot.slane %v2101, 4
        %v2103 = vadd.f32 %v2101, %v2102
        %v2104 = vrot.slane %v2103, 2
        %v2105 = vadd.f32 %v2103, %v2104
        %v2106 = vrot.slane %v2105, 1
        %v2107 = vadd.f32 %v2105, %v2106
        %v2112 = vsel %vm223, %v2093, %v2086
        %v2113 = vsel %vm225, %v2100, %v2112
        %v2114 = vsel %vm227, %v2107, %v2113
        %v2115 = vsel %vm229, %v2114, 0
        %2117 = vmatprep.subr.mxu0 0.0
        %2118 = vmatpush1.msra.mxu0 %v184
        %2119 = vmatprep.subr.mxu0 0.0
        %2120 = vmatpush1.msra.mxu0 %v185
        %2121 = vmatprep.subr.mxu0 0.0
        %2122 = vmatpush1.msra.mxu0 0.0
        %2123 = vmatprep.subr.mxu0 0.0
        %2124 = vmatpush1.msra.mxu0 0.0
        %2125 = vmatprep.subr.mxu0 0.0
        %2126 = vmatpush1.msra.mxu0 0.0
        %2127 = vmatprep.subr.mxu0 0.0
        %2128 = vmatpush1.msra.mxu0 0.0
        %2129 = vmatprep.subr.mxu0 0.0
        %2130 = vmatpush1.msra.mxu0 0.0
        %2131 = vmatprep.subr.mxu0 0.0
        %2132 = vmatpush1.msra.mxu0 0.0
        %2133 = vmatprep.subr.mxu0 0.0
        %2134 = vmatpush1.msra.mxu0 0.0
        %2135 = vmatprep.subr.mxu0 0.0
        %2136 = vmatpush1.msra.mxu0 0.0
        %2137 = vmatprep.subr.mxu0 0.0
        %2138 = vmatpush1.msra.mxu0 0.0
        %2139 = vmatprep.subr.mxu0 0.0
        %2140 = vmatpush1.msra.mxu0 0.0
        %2141 = vmatprep.subr.mxu0 0.0
        %2142 = vmatpush1.msra.mxu0 0.0
        %2143 = vmatprep.subr.mxu0 0.0
        %2144 = vmatpush1.msra.mxu0 0.0
        %2145 = vmatprep.subr.mxu0 0.0
        %2146 = vmatpush1.msra.mxu0 0.0
        %2147 = vmatprep.subr.mxu0 0.0
        %2148 = vmatpush1.msra.mxu0 0.0
        %2149 = vmatprep.subr.mxu0 0.0
        %2150 = vmatpush1.msra.mxu0 0.0
        %2151 = vmatprep.subr.mxu0 0.0
        %2152 = vmatpush1.msra.mxu0 0.0
        %2153 = vmatprep.subr.mxu0 0.0
        %2154 = vmatpush1.msra.mxu0 0.0
        %2155 = vmatprep.subr.mxu0 0.0
        %2156 = vmatpush1.msra.mxu0 0.0
        %2157 = vmatprep.subr.mxu0 0.0
        %2158 = vmatpush1.msra.mxu0 0.0
        %2159 = vmatprep.subr.mxu0 0.0
        %2160 = vmatpush1.msra.mxu0 0.0
        %2161 = vmatprep.subr.mxu0 0.0
        %2162 = vmatpush1.msra.mxu0 0.0
        %2163 = vmatprep.subr.mxu0 0.0
        %2164 = vmatpush1.msra.mxu0 0.0
        %2165 = vmatprep.subr.mxu0 0.0
        %2166 = vmatpush1.msra.mxu0 0.0
        %2167 = vmatprep.subr.mxu0 0.0
        %2168 = vmatpush1.msra.mxu0 0.0
        %2169 = vmatprep.subr.mxu0 0.0
        %2170 = vmatpush1.msra.mxu0 0.0
        %2171 = vmatprep.subr.mxu0 0.0
        %2172 = vmatpush1.msra.mxu0 0.0
        %2173 = vmatprep.subr.mxu0 0.0
        %2174 = vmatpush1.msra.mxu0 0.0
        %2175 = vmatprep.subr.mxu0 0.0
        %2176 = vmatpush1.msra.mxu0 0.0
        %2177 = vmatprep.subr.mxu0 0.0
        %2178 = vmatpush1.msra.mxu0 0.0
        %2179 = vmatprep.subr.mxu0 0.0
        %2180 = vmatpush1.msra.mxu0 0.0
        %2181 = vmatprep.mubr.f32.mxu0 0.0
        %2182 = vmatmul.mubr.f32.gmra.mrb[0].mxu0 %v2115
        %v2183 = vpop.f32.mrb[0].mxu0
        %v2184 = vadd.f32 0.0, %v2183
        %v2185 = vpop.f32.mrb[0].mxu0
        %2186 = vdwg.mxu0
        %v2187 = vmul.f32 %v2184, 0.5
        %v2190 = vunpack.c.l.s4 1966171168
        %v2191 = vunpack.c.0.s8 %v2190
        %v2192 = vlaneseq
        %v2193 = vshrl.u32 %v2192, 7
        %v2194 = vsub.s32 %v2191, %v2193
        %v2195 = vrot.slane %v2187, %v2194
        %v2196 = vcombine.high %v2195, %v2195
        %v2198 = vunpack.c.l.s4 1966171168
        %v2199 = vunpack.c.0.s8 %v2198
        %v2200 = vlaneseq
        %v2201 = vshrl.u32 %v2200, 7
        %v2202 = vsub.s32 %v2199, %v2201
        %v2203 = vrot.slane %v2195, %v2202
        %v2205 = vunpack.c.l.s4 1966171168
        %v2206 = vunpack.c.0.s8 %v2205
        %v2207 = vlaneseq
        %v2208 = vshrl.u32 %v2207, 7
        %v2209 = vsub.s32 %v2206, %v2208
        %v2210 = vrot.slane %v2196, %v2209
        %v2211 = vcombine.high %v2203, %v2203
        %v2212 = vcombine.high %v2210, %v2210
        %2217 = vst [vmem:[%s182 + $0xd] sm:$0x1] %v2203
        %2218 = vst [vmem:[%s182 + $0x1d] sm:$0x1] %v2210
        %2219 = vst [vmem:[%s182 + $0x2d] sm:$0x1] %v2211
        %2220 = vst [vmem:[%s182 + $0x3d] sm:$0x1] %v2212
        %s2221 = smul.u32 4, %s17
        %p2222 = scmp.lt.s32.totalorder %s2221, 7
        %s2223 = scalar_select %p2222, %s2221, 7
        %s2224 = smul.addr %s2223, 2
        %s2225 = smul.addr %s2224, 8
        %s2226 = scalar_lea.vmem %s2, %s2225
        // Predicated region
        $region37: #{tpu_custom_call.1} parent=27 // pred_check
          %p2227 = pneg %p82
        $region38: #{tpu_custom_call.1} parent=27 // pred_check_branch
          %2229 = sbr.rel (%p2227) target = $region40
        $region39: #{tpu_custom_call.1} parent=27 // pred_region
          %s2230 = smul.u32 4, %s17
        $region40: #{tpu_custom_call.1} parent=27 // pred_fallthru
          _
      $region28: #{tpu_custom_call.1} parent=5 // pred_fallthru
        _
      %p2231 = scmp.le.s32.totalorder 2, %s12
      // Predicated region
      $region41: #{tpu_custom_call.1} parent=5 // pred_check
        %p2232 = pneg %p2231
      $region42: #{tpu_custom_call.1} parent=5 // pred_check_branch
        %2234 = sbr.rel (%p2232) target = $region44
      $region43: #{tpu_custom_call.1} parent=5 // pred_region
        %s2235 = ssub.s32 %s12, 2
        // Predicated region
        $region45: #{tpu_custom_call.1} parent=43 // pred_check
          %p2236 = pneg %p88
        $region46: #{tpu_custom_call.1} parent=43 // pred_check_branch
          %2238 = sbr.rel (%p2236) target = $region48
        $region47: #{tpu_custom_call.1} parent=43 // pred_region
          %s2239 = smul.u32 4, %s18
          %p2240 = scmp.lt.s32.totalorder %s2239, 7
          %s2241 = scalar_select %p2240, %s2239, 7
          %s2242 = smul.addr %s2241, 2
          %s2243 = smul.addr %s2242, 8
          %s2244 = scalar_lea.vmem %s2, %s2243
        $region48: #{tpu_custom_call.1} parent=43 // pred_fallthru
          _
      $region44: #{tpu_custom_call.1} parent=5 // pred_fallthru
        _
    $region6: #{tpu_custom_call.1} parent=1 // loop_footer
      %s16 = sadd.s32 1, %s12
    $region7: #{tpu_custom_call.1} parent=1 // loop_footer_branch
      %11 = sbr.rel target = $region3
    $region8: #{tpu_custom_call.1} parent=1 // loop_exit
      _
    %2245 = vsyncpa [#allocation3], 1
    %s2246 = scalar_lea.sflag [#allocation3], 1
    %2247 = vsyncpa %s2246, 1
    %2248 = vsyncpa [#allocation5], 1

</llo_original>
